<compile_context>
chip_gen: v6e
topology: v6e:2x2x1
jax: 0.10.0
libtpu: 0.0.40
codegen_flags: <defaults>
</compile_context>

<pallas_src>
import jax
import jax.numpy as jnp
import numpy as np
from jax import lax
from jax.experimental import pallas as pl
from jax.experimental.pallas import tpu as pltpu

# Small hyper-parameters consistent with PrmModel.__init__
VOCAB = 100        # vocab_size
VOCAB_PAD = 128    # lane-padded vocab for the in-kernel one-hot gather
EMB   = 32         # embedding_size
HID   = 32         # lstm hidden_size (bidirectional -> 2*HID features)
ATTN  = 32         # attn_hidden_size
RSZ   = 8          # r_size
CLS   = 32         # cls_hidden_size
LBL   = 4          # num_labels
B     = 2          # batch
T     = 8          # sequence length

H2     = 2 * HID   # 64  : concatenated fwd|bwd hidden width
GATES2 = 4 * H2    # 256 : fused gate lanes, blocks (i, f, o, g), each block = [fwd|bwd]

# slab-A row offsets (256-lane recurrence slab)
A_EMBWIH = 0            # rows   0:128  embedding folded into W_ih      [128, 256]
A_WHH    = 128          # rows 128:192  block-diagonal recurrent W_hh   [ 64, 256]
A_BIH    = 192          # row  192      fused input-projection bias     [  1, 256]
A_ROWS   = 200

# slab-B row offsets (32-lane attention / classifier slab)
B_WS1, B_BS1 = 0, 64
B_WS2, B_BS2 = 72, 104
B_WFF, B_BFF = 112, 120
B_WPR, B_BPR = 128, 160
B_ROWS = 168


def prm_kernel(tok_ref,                 # [T*B, 1] int32 (time-major flattened tokens)
               wa_ref,                  # [A_ROWS, 256] recurrence slab
               wb_ref,                  # [B_ROWS, 32]  attention/classifier slab
               out_ref,                 # [B, LBL]
               attn_ref):               # [B, RSZ, T]
    f32 = jnp.float32
    H = HID
    prec = lax.Precision.DEFAULT

    def mm(a, b):
        return jnp.dot(a, b, preferred_element_type=f32, precision=prec)

    # ---- embedding lookup + input projection fused: ONE [T*B,128] @ [128,256] matmul ----
    toks = tok_ref[...]                                                    # [T*B, 1] i32
    vocab_iota = lax.broadcasted_iota(jnp.int32, (T * B, VOCAB_PAD), 1)
    onehot = (toks == vocab_iota).astype(f32)                              # [T*B, 128]
    gx = mm(onehot, wa_ref[A_EMBWIH:A_EMBWIH + VOCAB_PAD, :]) \
        + wa_ref[A_BIH:A_BIH + 1, :]                                       # [T*B, 256]

    whh = wa_ref[A_WHH:A_WHH + H2, :]                                      # [64, 256] block-diag

    # hoisted per-lane constants (JAX does not CSE broadcasts -> build once)
    lane = lax.broadcasted_iota(jnp.int32, (B, GATES2), 1)                 # [B, 256]
    is_g = lane >= 3 * H2                                                  # tanh (g) lanes
    gsc = jnp.where(is_g, 1.0, 0.5).astype(f32)                            # sigmoid = 0.5*tanh(0.5x)+0.5
    gof = jnp.where(is_g, 0.0, 0.5).astype(f32)
    fwd_gate = (lane % H2) < H                                             # fwd half of each gate block
    lane64 = lax.broadcasted_iota(jnp.int32, (B, H2), 1)
    fwd_half = lane64 < H                                                  # fwd half of the [*, 2H] state

    h_cat = jnp.zeros((B, H2), f32)                                        # lanes [0:H]=fwd, [H:2H]=bwd
    c_cat = jnp.zeros((B, H2), f32)
    h_steps = []

    # ---- fully unrolled recurrence: ONE [2,64]@[64,256] dot + 2 merged tanh per step ----
    for k in range(T):
        kb = T - 1 - k
        # fwd gate lanes take time k, bwd gate lanes take time T-1-k (off the h-chain)
        px = jnp.where(fwd_gate, gx[k * B:(k + 1) * B, :], gx[kb * B:(kb + 1) * B, :])
        pre = px + mm(h_cat, whh)                                          # [B, 256]
        a = gsc * jnp.tanh(gsc * pre) + gof                                # all gates, one EUP pass
        i_c = a[:, 0 * H2:1 * H2]
        f_c = a[:, 1 * H2:2 * H2]
        o_c = a[:, 2 * H2:3 * H2]
        g_c = a[:, 3 * H2:4 * H2]
        c_cat = f_c * c_cat + i_c * g_c
        h_cat = o_c * jnp.tanh(c_cat)                                      # one 64-lane tanh for both dirs
        h_steps.append(h_cat)

    # ---- register-resident hidden-state slab, batch-major [B*T, 2H] ----
    # row(b, t) = [h_fwd(t) | h_bwd(t)] = fwd half of step t, bwd half of step T-1-t
    hs_t = [jnp.where(fwd_half, h_steps[t], h_steps[T - 1 - t]) for t in range(T)]   # [B, 2H]
    hs_rows = [jnp.concatenate([hs_t[t][b:b + 1, :] for t in range(T)], axis=0)
               for b in range(B)]                                          # per-batch [T, 2H]
    hs_flat = jnp.concatenate(hs_rows, axis=0)                             # [B*T, 2H], row = b*T + t

    # ---- attention: batched projections over [B*T, 2H] ----
    ws1 = wb_ref[B_WS1:B_WS1 + H2, :]
    bs1 = wb_ref[B_BS1:B_BS1 + 1, :]
    ws2p = wb_ref[B_WS2:B_WS2 + ATTN, :]                                   # [32,32], cols >= RSZ are 0
    bs2p = wb_ref[B_BS2:B_BS2 + 1, :]
    s1 = jnp.tanh(mm(hs_flat, ws1) + bs1)                                  # [B*T, ATTN]
    s2 = (mm(s1, ws2p) + bs2p)[:, :RSZ]                                    # [B*T, RSZ]

    annt_list, pooled_list = [], []
    for b in range(B):
        scores = s2[b * T:(b + 1) * T, :].T                                # [RSZ, T]
        m = jnp.max(scores, axis=-1, keepdims=True)
        e = jnp.exp(scores - m)
        annt_b = e / jnp.sum(e, axis=-1, keepdims=True)                    # softmax over T
        annt_list.append(annt_b.reshape(1, RSZ, T))
        emb_b = mm(annt_b, hs_rows[b])                                     # [RSZ, 2H]
        # MaxPool1d(kernel=2H) + squeeze(2) == max over the feature axis
        pooled_list.append(jnp.max(emb_b, axis=-1).reshape(1, RSZ))
    attn_ref[...] = jnp.concatenate(annt_list, axis=0)                     # single full-tensor store
    pooled = jnp.concatenate(pooled_list, axis=0)                          # [B, RSZ]

    # ---- classifier ----
    wff = wb_ref[B_WFF:B_WFF + RSZ, :]
    bff = wb_ref[B_BFF:B_BFF + 1, :]
    wprp = wb_ref[B_WPR:B_WPR + CLS, :]                                    # [32,32], cols >= LBL are 0
    bprp = wb_ref[B_BPR:B_BPR + 1, :]
    ff = jnp.maximum(mm(pooled, wff) + bff, 0.0)                           # [B, CLS]
    logits = (mm(ff, wprp) + bprp)[:, :LBL]                                # [B, LBL]
    m = jnp.max(logits, axis=-1, keepdims=True)
    e = jnp.exp(logits - m)
    out_ref[...] = e / jnp.sum(e, axis=-1, keepdims=True)                  # softmax over labels


def pack_params(p):
    """One-time host-side weight packing:
       * per-gate [fwd|bwd] interleaved 256-lane layout, gate order (i, f, o, g);
       * embedding folded into W_ih (HIGHEST precision);
       * W_hh packed block-diagonally so one dot drives both directions;
       * everything consolidated into two VMEM slabs."""
    f32 = jnp.float32
    order = (0, 1, 3, 2)   # reference gate order (i=0, f=1, g=2, o=3) -> packed blocks (i, f, o, g)
    H = HID

    wih_cat = jnp.concatenate(
        [jnp.concatenate([p["wih_f"][g], p["wih_b"][g]], axis=1) for g in order], axis=1)  # [EMB, 256]
    bih_cat = jnp.concatenate(
        [jnp.concatenate([p["b_f"][g], p["b_b"][g]], axis=1) for g in order], axis=1)      # [1, 256]

    emb_pad = jnp.pad(p["embedding"], ((0, VOCAB_PAD - VOCAB), (0, 0)))
    emb_wih = jnp.dot(emb_pad, wih_cat, precision=lax.Precision.HIGHEST,
                      preferred_element_type=f32)                                          # [128, 256]

    whh_blk = jnp.zeros((H2, GATES2), f32)   # rows 0:H act on h_fwd, rows H:2H on h_bwd
    for gi, g in enumerate(order):
        whh_blk = whh_blk.at[0:H, gi * H2:gi * H2 + H].set(p["whh_f"][g])
        whh_blk = whh_blk.at[H:H2, gi * H2 + H:(gi + 1) * H2].set(p["whh_b"][g])

    wa = jnp.zeros((A_ROWS, GATES2), f32)
    wa = wa.at[A_EMBWIH:A_EMBWIH + VOCAB_PAD, :].set(emb_wih)
    wa = wa.at[A_WHH:A_WHH + H2, :].set(whh_blk)
    wa = wa.at[A_BIH:A_BIH + 1, :].set(bih_cat)

    wb = jnp.zeros((B_ROWS, 32), f32)
    wb = wb.at[B_WS1:B_WS1 + H2, :].set(p["ws1"])
    wb = wb.at[B_BS1:B_BS1 + 1, :].set(p["bs1"])
    wb = wb.at[B_WS2:B_WS2 + ATTN, :RSZ].set(p["ws2"])
    wb = wb.at[B_BS2:B_BS2 + 1, :RSZ].set(p["bs2"])
    wb = wb.at[B_WFF:B_WFF + RSZ, :].set(p["wff"])
    wb = wb.at[B_BFF:B_BFF + 1, :].set(p["bff"])
    wb = wb.at[B_WPR:B_WPR + CLS, :LBL].set(p["wpr"])
    wb = wb.at[B_BPR:B_BPR + 1, :LBL].set(p["bpr"])

    return dict(wa=wa, wb=wb)


@jax.jit
def prm_forward(tokens, pk):
    # Only per-call host-side op: flatten tokens time-major (row = t*B + b).
    tok_tm = jnp.transpose(tokens).reshape(T * B, 1).astype(jnp.int32)

    ins = (tok_tm, pk["wa"], pk["wb"])
    out_shape = (jax.ShapeDtypeStruct((B, LBL), jnp.float32),
                 jax.ShapeDtypeStruct((B, RSZ, T), jnp.float32))

    return pl.pallas_call(
        prm_kernel,
        out_shape=out_shape,
        in_specs=[pl.BlockSpec(memory_space=pltpu.MemorySpace.VMEM) for _ in ins],
        out_specs=(pl.BlockSpec(memory_space=pltpu.MemorySpace.VMEM),
                   pl.BlockSpec(memory_space=pltpu.MemorySpace.VMEM)),
    )(*ins)


def init_params(key):
    ks = jax.random.split(key, 15)

    def nrm(k, shape, scale=0.1):
        return scale * jax.random.normal(k, shape, dtype=jnp.float32)

    return dict(
        embedding=nrm(ks[0], (VOCAB, EMB), 1.0),
        wih_f=nrm(ks[1], (4, EMB, HID)),
        whh_f=nrm(ks[2], (4, HID, HID)),
        b_f=nrm(ks[3], (4, 1, HID)),
        wih_b=nrm(ks[4], (4, EMB, HID)),
        whh_b=nrm(ks[5], (4, HID, HID)),
        b_b=nrm(ks[6], (4, 1, HID)),
        ws1=nrm(ks[7], (2 * HID, ATTN)),
        bs1=nrm(ks[8], (1, ATTN)),
        ws2=nrm(ks[9], (ATTN, RSZ)),
        bs2=nrm(ks[10], (1, RSZ)),
        wff=nrm(ks[11], (RSZ, CLS)),
        bff=nrm(ks[12], (1, CLS)),
        wpr=nrm(ks[13], (CLS, LBL)),
        bpr=nrm(ks[14], (1, LBL)),
    )


def ref_forward(tokens, p):
    """Pure-JAX reference mirroring PrmModel.forward exactly (uses unpacked params)."""
    emb = jnp.take(p["embedding"], tokens, axis=0)        # [B, T, E]
    xs = jnp.transpose(emb, (1, 0, 2))                    # [T, B, E]

    def run_dir(wih, whh, b, reverse):
        seq = xs[::-1] if reverse else xs

        def cell(carry, x_t):
            h, c = carry
            i = jax.nn.sigmoid(x_t @ wih[0] + h @ whh[0] + b[0])
            f = jax.nn.sigmoid(x_t @ wih[1] + h @ whh[1] + b[1])
            g = jnp.tanh(x_t @ wih[2] + h @ whh[2] + b[2])
            o = jax.nn.sigmoid(x_t @ wih[3] + h @ whh[3] + b[3])
            c2 = f * c + i * g
            h2 = o * jnp.tanh(c2)
            return (h2, c2), h2

        init = (jnp.zeros((B, HID), jnp.float32), jnp.zeros((B, HID), jnp.float32))
        _, hs = lax.scan(cell, init, seq)                 # [T, B, H]
        return hs[::-1] if reverse else hs

    hs = jnp.concatenate([run_dir(p["wih_f"], p["whh_f"], p["b_f"], False),
                          run_dir(p["wih_b"], p["whh_b"], p["b_b"], True)], axis=-1)
    hs_btd = jnp.transpose(hs, (1, 0, 2))                 # [B, T, 2H]
    s1 = jnp.tanh(hs_btd @ p["ws1"] + p["bs1"][0])
    s2 = s1 @ p["ws2"] + p["bs2"][0]                      # [B, T, R]
    scores = jnp.transpose(s2, (0, 2, 1))                 # [B, R, T]
    annt = jax.nn.softmax(scores, axis=2)
    emb_m = jnp.einsum("brt,btd->brd", annt, hs_btd)      # [B, R, 2H]
    pooled = jnp.max(emb_m, axis=-1)                      # MaxPool1d(2H) + squeeze
    ff = jax.nn.relu(pooled @ p["wff"] + p["bff"][0])
    logits = ff @ p["wpr"] + p["bpr"][0]
    return jax.nn.softmax(logits, axis=1), annt


if __name__ == "__main__":
    key = jax.random.PRNGKey(0)
    pkey, tkey = jax.random.split(key)
    params = init_params(pkey)
    tokens = jax.random.randint(tkey, (B, T), 0, VOCAB, dtype=jnp.int32)

    packed = pack_params(params)          # one-time weight re-layout (not per forward)

    outputs, attn_weights = jax.block_until_ready(prm_forward(tokens, packed))
    ref_out, ref_attn = jax.block_until_ready(ref_forward(tokens, params))

    np.testing.assert_allclose(np.asarray(outputs), np.asarray(ref_out), rtol=2e-3, atol=2e-3)
    np.testing.assert_allclose(np.asarray(attn_weights), np.asarray(ref_attn), rtol=2e-3, atol=2e-3)
    print("KERNEL_OK")
</pallas_src>

<mosaic_0001>
module attributes {stable_mosaic.version = 11 : i64} {
  func.func @prm_kernel(%arg0: memref<16x1xi32, #tpu.memory_space<vmem>>, %arg1: memref<200x256xf32, #tpu.memory_space<vmem>>, %arg2: memref<168x32xf32, #tpu.memory_space<vmem>>, %arg3: memref<2x4xf32, #tpu.memory_space<vmem>>, %arg4: memref<2x8x8xf32, #tpu.memory_space<vmem>>) attributes {dimension_semantics = [], scalar_prefetch = 0 : i64, scratch_operands = 0 : i64, tpu.core_type = #tpu.core_type<tc>} {
    %c0 = arith.constant 0 : index
    %c0_0 = arith.constant 0 : index
    %0 = vector.load %arg0[%c0, %c0_0] : memref<16x1xi32, #tpu.memory_space<vmem>>, vector<16x1xi32>
    %1 = tpu.iota {dimensions = array<i32: 1>} : vector<16x128xi32>
    %2 = vector.broadcast %0 : vector<16x1xi32> to vector<16x128xi32>
    %3 = arith.cmpi eq, %2, %1 : vector<16x128xi32>
    %4 = arith.extui %3 : vector<16x128xi1> to vector<16x128xi32>
    %5 = arith.sitofp %4 : vector<16x128xi32> to vector<16x128xf32>
    %c0_1 = arith.constant 0 : index
    %c0_2 = arith.constant 0 : index
    %6 = vector.load %arg1[%c0_1, %c0_2] : memref<200x256xf32, #tpu.memory_space<vmem>>, vector<128x256xf32>
    %cst = arith.constant dense<0.000000e+00> : vector<16x256xf32>
    %7 = tpu.matmul %5, %6, %cst {dimension_numbers = #tpu.dot_dimension_numbers<[1], [0], [0], [1], [0, 0, 1, 1], [], []>} : vector<16x128xf32>, vector<128x256xf32>, vector<16x256xf32> -> vector<16x256xf32>
    %c192 = arith.constant 192 : index
    %c0_3 = arith.constant 0 : index
    %8 = vector.load %arg1[%c192, %c0_3] : memref<200x256xf32, #tpu.memory_space<vmem>>, vector<1x256xf32>
    %9 = vector.broadcast %8 : vector<1x256xf32> to vector<16x256xf32>
    %10 = arith.addf %7, %9 : vector<16x256xf32>
    %c128 = arith.constant 128 : index
    %c0_4 = arith.constant 0 : index
    %11 = vector.load %arg1[%c128, %c0_4] : memref<200x256xf32, #tpu.memory_space<vmem>>, vector<64x256xf32>
    %12 = tpu.iota {dimensions = array<i32: 1>} : vector<2x256xi32>
    %c192_i32 = arith.constant 192 : i32
    %13 = vector.broadcast %c192_i32 : i32 to vector<2x256xi32>
    %14 = arith.cmpi sge, %12, %13 : vector<2x256xi32>
    %cst_5 = arith.constant 1.000000e+00 : f32
    %cst_6 = arith.constant 5.000000e-01 : f32
    %15 = vector.broadcast %cst_5 : f32 to vector<2x256xf32>
    %16 = vector.broadcast %cst_6 : f32 to vector<2x256xf32>
    %17 = arith.select %14, %15, %16 : vector<2x256xi1>, vector<2x256xf32>
    %cst_7 = arith.constant 0.000000e+00 : f32
    %cst_8 = arith.constant 5.000000e-01 : f32
    %18 = vector.broadcast %cst_7 : f32 to vector<2x256xf32>
    %19 = vector.broadcast %cst_8 : f32 to vector<2x256xf32>
    %20 = arith.select %14, %18, %19 : vector<2x256xi1>, vector<2x256xf32>
    %c64_i32 = arith.constant 64 : i32
    %c0_i32 = arith.constant 0 : i32
    %21 = arith.cmpi eq, %c64_i32, %c0_i32 : i32
    %c1_i32 = arith.constant 1 : i32
    %22 = arith.select %21, %c1_i32, %c64_i32 : i32
    %23 = vector.broadcast %22 : i32 to vector<2x256xi32>
    %24 = arith.remsi %12, %23 : vector<2x256xi32>
    %c0_i32_9 = arith.constant 0 : i32
    %25 = vector.broadcast %c0_i32_9 : i32 to vector<2x256xi32>
    %26 = arith.cmpi ne, %24, %25 : vector<2x256xi32>
    %c0_i32_10 = arith.constant 0 : i32
    %27 = vector.broadcast %c0_i32_10 : i32 to vector<2x256xi32>
    %28 = arith.cmpi slt, %24, %27 : vector<2x256xi32>
    %c0_i32_11 = arith.constant 0 : i32
    %29 = arith.cmpi slt, %22, %c0_i32_11 : i32
    %30 = vector.broadcast %29 : i1 to vector<2x256xi1>
    %31 = vector.broadcast %30 : vector<2x256xi1> to vector<2x256xi1>
    %32 = arith.xori %28, %31 : vector<2x256xi1>
    %33 = arith.andi %32, %26 : vector<2x256xi1>
    %34 = vector.broadcast %22 : i32 to vector<2x256xi32>
    %35 = arith.addi %24, %34 : vector<2x256xi32>
    %36 = arith.select %33, %35, %24 : vector<2x256xi1>, vector<2x256xi32>
    %c32_i32 = arith.constant 32 : i32
    %37 = vector.broadcast %c32_i32 : i32 to vector<2x256xi32>
    %38 = arith.cmpi slt, %36, %37 : vector<2x256xi32>
    %39 = tpu.iota {dimensions = array<i32: 1>} : vector<2x64xi32>
    %c32_i32_12 = arith.constant 32 : i32
    %40 = vector.broadcast %c32_i32_12 : i32 to vector<2x64xi32>
    %41 = arith.cmpi slt, %39, %40 : vector<2x64xi32>
    %cst_13 = arith.constant 0.000000e+00 : f32
    %42 = vector.broadcast %cst_13 : f32 to vector<2x64xf32>
    %cst_14 = arith.constant 0.000000e+00 : f32
    %43 = vector.broadcast %cst_14 : f32 to vector<2x64xf32>
    %44 = vector.extract_strided_slice %10 {offsets = [0, 0], sizes = [2, 256], strides = [1, 1]} : vector<16x256xf32> to vector<2x256xf32>
    %45 = vector.extract_strided_slice %10 {offsets = [14, 0], sizes = [2, 256], strides = [1, 1]} : vector<16x256xf32> to vector<2x256xf32>
    %46 = arith.select %38, %44, %45 : vector<2x256xi1>, vector<2x256xf32>
    %cst_15 = arith.constant dense<0.000000e+00> : vector<2x256xf32>
    %47 = tpu.matmul %42, %11, %cst_15 {dimension_numbers = #tpu.dot_dimension_numbers<[1], [0], [0], [1], [0, 0, 1, 1], [], []>} : vector<2x64xf32>, vector<64x256xf32>, vector<2x256xf32> -> vector<2x256xf32>
    %48 = arith.addf %46, %47 : vector<2x256xf32>
    %49 = arith.mulf %17, %48 : vector<2x256xf32>
    %50 = math.tanh %49 : vector<2x256xf32>
    %51 = arith.mulf %17, %50 : vector<2x256xf32>
    %52 = arith.addf %51, %20 : vector<2x256xf32>
    %53 = vector.extract_strided_slice %52 {offsets = [0, 0], sizes = [2, 64], strides = [1, 1]} : vector<2x256xf32> to vector<2x64xf32>
    %54 = vector.extract_strided_slice %52 {offsets = [0, 64], sizes = [2, 64], strides = [1, 1]} : vector<2x256xf32> to vector<2x64xf32>
    %55 = vector.extract_strided_slice %52 {offsets = [0, 128], sizes = [2, 64], strides = [1, 1]} : vector<2x256xf32> to vector<2x64xf32>
    %56 = vector.extract_strided_slice %52 {offsets = [0, 192], sizes = [2, 64], strides = [1, 1]} : vector<2x256xf32> to vector<2x64xf32>
    %57 = arith.mulf %54, %43 : vector<2x64xf32>
    %58 = arith.mulf %53, %56 : vector<2x64xf32>
    %59 = arith.addf %57, %58 : vector<2x64xf32>
    %60 = math.tanh %59 : vector<2x64xf32>
    %61 = arith.mulf %55, %60 : vector<2x64xf32>
    %62 = vector.extract_strided_slice %10 {offsets = [2, 0], sizes = [2, 256], strides = [1, 1]} : vector<16x256xf32> to vector<2x256xf32>
    %63 = vector.extract_strided_slice %10 {offsets = [12, 0], sizes = [2, 256], strides = [1, 1]} : vector<16x256xf32> to vector<2x256xf32>
    %64 = arith.select %38, %62, %63 : vector<2x256xi1>, vector<2x256xf32>
    %cst_16 = arith.constant dense<0.000000e+00> : vector<2x256xf32>
    %65 = tpu.matmul %61, %11, %cst_16 {dimension_numbers = #tpu.dot_dimension_numbers<[1], [0], [0], [1], [0, 0, 1, 1], [], []>} : vector<2x64xf32>, vector<64x256xf32>, vector<2x256xf32> -> vector<2x256xf32>
    %66 = arith.addf %64, %65 : vector<2x256xf32>
    %67 = arith.mulf %17, %66 : vector<2x256xf32>
    %68 = math.tanh %67 : vector<2x256xf32>
    %69 = arith.mulf %17, %68 : vector<2x256xf32>
    %70 = arith.addf %69, %20 : vector<2x256xf32>
    %71 = vector.extract_strided_slice %70 {offsets = [0, 0], sizes = [2, 64], strides = [1, 1]} : vector<2x256xf32> to vector<2x64xf32>
    %72 = vector.extract_strided_slice %70 {offsets = [0, 64], sizes = [2, 64], strides = [1, 1]} : vector<2x256xf32> to vector<2x64xf32>
    %73 = vector.extract_strided_slice %70 {offsets = [0, 128], sizes = [2, 64], strides = [1, 1]} : vector<2x256xf32> to vector<2x64xf32>
    %74 = vector.extract_strided_slice %70 {offsets = [0, 192], sizes = [2, 64], strides = [1, 1]} : vector<2x256xf32> to vector<2x64xf32>
    %75 = arith.mulf %72, %59 : vector<2x64xf32>
    %76 = arith.mulf %71, %74 : vector<2x64xf32>
    %77 = arith.addf %75, %76 : vector<2x64xf32>
    %78 = math.tanh %77 : vector<2x64xf32>
    %79 = arith.mulf %73, %78 : vector<2x64xf32>
    %80 = vector.extract_strided_slice %10 {offsets = [4, 0], sizes = [2, 256], strides = [1, 1]} : vector<16x256xf32> to vector<2x256xf32>
    %81 = vector.extract_strided_slice %10 {offsets = [10, 0], sizes = [2, 256], strides = [1, 1]} : vector<16x256xf32> to vector<2x256xf32>
    %82 = arith.select %38, %80, %81 : vector<2x256xi1>, vector<2x256xf32>
    %cst_17 = arith.constant dense<0.000000e+00> : vector<2x256xf32>
    %83 = tpu.matmul %79, %11, %cst_17 {dimension_numbers = #tpu.dot_dimension_numbers<[1], [0], [0], [1], [0, 0, 1, 1], [], []>} : vector<2x64xf32>, vector<64x256xf32>, vector<2x256xf32> -> vector<2x256xf32>
    %84 = arith.addf %82, %83 : vector<2x256xf32>
    %85 = arith.mulf %17, %84 : vector<2x256xf32>
    %86 = math.tanh %85 : vector<2x256xf32>
    %87 = arith.mulf %17, %86 : vector<2x256xf32>
    %88 = arith.addf %87, %20 : vector<2x256xf32>
    %89 = vector.extract_strided_slice %88 {offsets = [0, 0], sizes = [2, 64], strides = [1, 1]} : vector<2x256xf32> to vector<2x64xf32>
    %90 = vector.extract_strided_slice %88 {offsets = [0, 64], sizes = [2, 64], strides = [1, 1]} : vector<2x256xf32> to vector<2x64xf32>
    %91 = vector.extract_strided_slice %88 {offsets = [0, 128], sizes = [2, 64], strides = [1, 1]} : vector<2x256xf32> to vector<2x64xf32>
    %92 = vector.extract_strided_slice %88 {offsets = [0, 192], sizes = [2, 64], strides = [1, 1]} : vector<2x256xf32> to vector<2x64xf32>
    %93 = arith.mulf %90, %77 : vector<2x64xf32>
    %94 = arith.mulf %89, %92 : vector<2x64xf32>
    %95 = arith.addf %93, %94 : vector<2x64xf32>
    %96 = math.tanh %95 : vector<2x64xf32>
    %97 = arith.mulf %91, %96 : vector<2x64xf32>
    %98 = vector.extract_strided_slice %10 {offsets = [6, 0], sizes = [2, 256], strides = [1, 1]} : vector<16x256xf32> to vector<2x256xf32>
    %99 = vector.extract_strided_slice %10 {offsets = [8, 0], sizes = [2, 256], strides = [1, 1]} : vector<16x256xf32> to vector<2x256xf32>
    %100 = arith.select %38, %98, %99 : vector<2x256xi1>, vector<2x256xf32>
    %cst_18 = arith.constant dense<0.000000e+00> : vector<2x256xf32>
    %101 = tpu.matmul %97, %11, %cst_18 {dimension_numbers = #tpu.dot_dimension_numbers<[1], [0], [0], [1], [0, 0, 1, 1], [], []>} : vector<2x64xf32>, vector<64x256xf32>, vector<2x256xf32> -> vector<2x256xf32>
    %102 = arith.addf %100, %101 : vector<2x256xf32>
    %103 = arith.mulf %17, %102 : vector<2x256xf32>
    %104 = math.tanh %103 : vector<2x256xf32>
    %105 = arith.mulf %17, %104 : vector<2x256xf32>
    %106 = arith.addf %105, %20 : vector<2x256xf32>
    %107 = vector.extract_strided_slice %106 {offsets = [0, 0], sizes = [2, 64], strides = [1, 1]} : vector<2x256xf32> to vector<2x64xf32>
    %108 = vector.extract_strided_slice %106 {offsets = [0, 64], sizes = [2, 64], strides = [1, 1]} : vector<2x256xf32> to vector<2x64xf32>
    %109 = vector.extract_strided_slice %106 {offsets = [0, 128], sizes = [2, 64], strides = [1, 1]} : vector<2x256xf32> to vector<2x64xf32>
    %110 = vector.extract_strided_slice %106 {offsets = [0, 192], sizes = [2, 64], strides = [1, 1]} : vector<2x256xf32> to vector<2x64xf32>
    %111 = arith.mulf %108, %95 : vector<2x64xf32>
    %112 = arith.mulf %107, %110 : vector<2x64xf32>
    %113 = arith.addf %111, %112 : vector<2x64xf32>
    %114 = math.tanh %113 : vector<2x64xf32>
    %115 = arith.mulf %109, %114 : vector<2x64xf32>
    %116 = vector.extract_strided_slice %10 {offsets = [8, 0], sizes = [2, 256], strides = [1, 1]} : vector<16x256xf32> to vector<2x256xf32>
    %117 = vector.extract_strided_slice %10 {offsets = [6, 0], sizes = [2, 256], strides = [1, 1]} : vector<16x256xf32> to vector<2x256xf32>
    %118 = arith.select %38, %116, %117 : vector<2x256xi1>, vector<2x256xf32>
    %cst_19 = arith.constant dense<0.000000e+00> : vector<2x256xf32>
    %119 = tpu.matmul %115, %11, %cst_19 {dimension_numbers = #tpu.dot_dimension_numbers<[1], [0], [0], [1], [0, 0, 1, 1], [], []>} : vector<2x64xf32>, vector<64x256xf32>, vector<2x256xf32> -> vector<2x256xf32>
    %120 = arith.addf %118, %119 : vector<2x256xf32>
    %121 = arith.mulf %17, %120 : vector<2x256xf32>
    %122 = math.tanh %121 : vector<2x256xf32>
    %123 = arith.mulf %17, %122 : vector<2x256xf32>
    %124 = arith.addf %123, %20 : vector<2x256xf32>
    %125 = vector.extract_strided_slice %124 {offsets = [0, 0], sizes = [2, 64], strides = [1, 1]} : vector<2x256xf32> to vector<2x64xf32>
    %126 = vector.extract_strided_slice %124 {offsets = [0, 64], sizes = [2, 64], strides = [1, 1]} : vector<2x256xf32> to vector<2x64xf32>
    %127 = vector.extract_strided_slice %124 {offsets = [0, 128], sizes = [2, 64], strides = [1, 1]} : vector<2x256xf32> to vector<2x64xf32>
    %128 = vector.extract_strided_slice %124 {offsets = [0, 192], sizes = [2, 64], strides = [1, 1]} : vector<2x256xf32> to vector<2x64xf32>
    %129 = arith.mulf %126, %113 : vector<2x64xf32>
    %130 = arith.mulf %125, %128 : vector<2x64xf32>
    %131 = arith.addf %129, %130 : vector<2x64xf32>
    %132 = math.tanh %131 : vector<2x64xf32>
    %133 = arith.mulf %127, %132 : vector<2x64xf32>
    %134 = vector.extract_strided_slice %10 {offsets = [10, 0], sizes = [2, 256], strides = [1, 1]} : vector<16x256xf32> to vector<2x256xf32>
    %135 = vector.extract_strided_slice %10 {offsets = [4, 0], sizes = [2, 256], strides = [1, 1]} : vector<16x256xf32> to vector<2x256xf32>
    %136 = arith.select %38, %134, %135 : vector<2x256xi1>, vector<2x256xf32>
    %cst_20 = arith.constant dense<0.000000e+00> : vector<2x256xf32>
    %137 = tpu.matmul %133, %11, %cst_20 {dimension_numbers = #tpu.dot_dimension_numbers<[1], [0], [0], [1], [0, 0, 1, 1], [], []>} : vector<2x64xf32>, vector<64x256xf32>, vector<2x256xf32> -> vector<2x256xf32>
    %138 = arith.addf %136, %137 : vector<2x256xf32>
    %139 = arith.mulf %17, %138 : vector<2x256xf32>
    %140 = math.tanh %139 : vector<2x256xf32>
    %141 = arith.mulf %17, %140 : vector<2x256xf32>
    %142 = arith.addf %141, %20 : vector<2x256xf32>
    %143 = vector.extract_strided_slice %142 {offsets = [0, 0], sizes = [2, 64], strides = [1, 1]} : vector<2x256xf32> to vector<2x64xf32>
    %144 = vector.extract_strided_slice %142 {offsets = [0, 64], sizes = [2, 64], strides = [1, 1]} : vector<2x256xf32> to vector<2x64xf32>
    %145 = vector.extract_strided_slice %142 {offsets = [0, 128], sizes = [2, 64], strides = [1, 1]} : vector<2x256xf32> to vector<2x64xf32>
    %146 = vector.extract_strided_slice %142 {offsets = [0, 192], sizes = [2, 64], strides = [1, 1]} : vector<2x256xf32> to vector<2x64xf32>
    %147 = arith.mulf %144, %131 : vector<2x64xf32>
    %148 = arith.mulf %143, %146 : vector<2x64xf32>
    %149 = arith.addf %147, %148 : vector<2x64xf32>
    %150 = math.tanh %149 : vector<2x64xf32>
    %151 = arith.mulf %145, %150 : vector<2x64xf32>
    %152 = vector.extract_strided_slice %10 {offsets = [12, 0], sizes = [2, 256], strides = [1, 1]} : vector<16x256xf32> to vector<2x256xf32>
    %153 = vector.extract_strided_slice %10 {offsets = [2, 0], sizes = [2, 256], strides = [1, 1]} : vector<16x256xf32> to vector<2x256xf32>
    %154 = arith.select %38, %152, %153 : vector<2x256xi1>, vector<2x256xf32>
    %cst_21 = arith.constant dense<0.000000e+00> : vector<2x256xf32>
    %155 = tpu.matmul %151, %11, %cst_21 {dimension_numbers = #tpu.dot_dimension_numbers<[1], [0], [0], [1], [0, 0, 1, 1], [], []>} : vector<2x64xf32>, vector<64x256xf32>, vector<2x256xf32> -> vector<2x256xf32>
    %156 = arith.addf %154, %155 : vector<2x256xf32>
    %157 = arith.mulf %17, %156 : vector<2x256xf32>
    %158 = math.tanh %157 : vector<2x256xf32>
    %159 = arith.mulf %17, %158 : vector<2x256xf32>
    %160 = arith.addf %159, %20 : vector<2x256xf32>
    %161 = vector.extract_strided_slice %160 {offsets = [0, 0], sizes = [2, 64], strides = [1, 1]} : vector<2x256xf32> to vector<2x64xf32>
    %162 = vector.extract_strided_slice %160 {offsets = [0, 64], sizes = [2, 64], strides = [1, 1]} : vector<2x256xf32> to vector<2x64xf32>
    %163 = vector.extract_strided_slice %160 {offsets = [0, 128], sizes = [2, 64], strides = [1, 1]} : vector<2x256xf32> to vector<2x64xf32>
    %164 = vector.extract_strided_slice %160 {offsets = [0, 192], sizes = [2, 64], strides = [1, 1]} : vector<2x256xf32> to vector<2x64xf32>
    %165 = arith.mulf %162, %149 : vector<2x64xf32>
    %166 = arith.mulf %161, %164 : vector<2x64xf32>
    %167 = arith.addf %165, %166 : vector<2x64xf32>
    %168 = math.tanh %167 : vector<2x64xf32>
    %169 = arith.mulf %163, %168 : vector<2x64xf32>
    %170 = vector.extract_strided_slice %10 {offsets = [14, 0], sizes = [2, 256], strides = [1, 1]} : vector<16x256xf32> to vector<2x256xf32>
    %171 = vector.extract_strided_slice %10 {offsets = [0, 0], sizes = [2, 256], strides = [1, 1]} : vector<16x256xf32> to vector<2x256xf32>
    %172 = arith.select %38, %170, %171 : vector<2x256xi1>, vector<2x256xf32>
    %cst_22 = arith.constant dense<0.000000e+00> : vector<2x256xf32>
    %173 = tpu.matmul %169, %11, %cst_22 {dimension_numbers = #tpu.dot_dimension_numbers<[1], [0], [0], [1], [0, 0, 1, 1], [], []>} : vector<2x64xf32>, vector<64x256xf32>, vector<2x256xf32> -> vector<2x256xf32>
    %174 = arith.addf %172, %173 : vector<2x256xf32>
    %175 = arith.mulf %17, %174 : vector<2x256xf32>
    %176 = math.tanh %175 : vector<2x256xf32>
    %177 = arith.mulf %17, %176 : vector<2x256xf32>
    %178 = arith.addf %177, %20 : vector<2x256xf32>
    %179 = vector.extract_strided_slice %178 {offsets = [0, 0], sizes = [2, 64], strides = [1, 1]} : vector<2x256xf32> to vector<2x64xf32>
    %180 = vector.extract_strided_slice %178 {offsets = [0, 64], sizes = [2, 64], strides = [1, 1]} : vector<2x256xf32> to vector<2x64xf32>
    %181 = vector.extract_strided_slice %178 {offsets = [0, 128], sizes = [2, 64], strides = [1, 1]} : vector<2x256xf32> to vector<2x64xf32>
    %182 = vector.extract_strided_slice %178 {offsets = [0, 192], sizes = [2, 64], strides = [1, 1]} : vector<2x256xf32> to vector<2x64xf32>
    %183 = arith.mulf %180, %167 : vector<2x64xf32>
    %184 = arith.mulf %179, %182 : vector<2x64xf32>
    %185 = arith.addf %183, %184 : vector<2x64xf32>
    %186 = math.tanh %185 : vector<2x64xf32>
    %187 = arith.mulf %181, %186 : vector<2x64xf32>
    %188 = arith.select %41, %61, %187 : vector<2x64xi1>, vector<2x64xf32>
    %189 = arith.select %41, %79, %169 : vector<2x64xi1>, vector<2x64xf32>
    %190 = arith.select %41, %97, %151 : vector<2x64xi1>, vector<2x64xf32>
    %191 = arith.select %41, %115, %133 : vector<2x64xi1>, vector<2x64xf32>
    %192 = arith.select %41, %133, %115 : vector<2x64xi1>, vector<2x64xf32>
    %193 = arith.select %41, %151, %97 : vector<2x64xi1>, vector<2x64xf32>
    %194 = arith.select %41, %169, %79 : vector<2x64xi1>, vector<2x64xf32>
    %195 = arith.select %41, %187, %61 : vector<2x64xi1>, vector<2x64xf32>
    %196 = vector.extract_strided_slice %188 {offsets = [0, 0], sizes = [1, 64], strides = [1, 1]} : vector<2x64xf32> to vector<1x64xf32>
    %197 = vector.extract_strided_slice %189 {offsets = [0, 0], sizes = [1, 64], strides = [1, 1]} : vector<2x64xf32> to vector<1x64xf32>
    %198 = vector.extract_strided_slice %190 {offsets = [0, 0], sizes = [1, 64], strides = [1, 1]} : vector<2x64xf32> to vector<1x64xf32>
    %199 = vector.extract_strided_slice %191 {offsets = [0, 0], sizes = [1, 64], strides = [1, 1]} : vector<2x64xf32> to vector<1x64xf32>
    %200 = vector.extract_strided_slice %192 {offsets = [0, 0], sizes = [1, 64], strides = [1, 1]} : vector<2x64xf32> to vector<1x64xf32>
    %201 = vector.extract_strided_slice %193 {offsets = [0, 0], sizes = [1, 64], strides = [1, 1]} : vector<2x64xf32> to vector<1x64xf32>
    %202 = vector.extract_strided_slice %194 {offsets = [0, 0], sizes = [1, 64], strides = [1, 1]} : vector<2x64xf32> to vector<1x64xf32>
    %203 = vector.extract_strided_slice %195 {offsets = [0, 0], sizes = [1, 64], strides = [1, 1]} : vector<2x64xf32> to vector<1x64xf32>
    %204 = tpu.concatenate %196, %197, %198, %199, %200, %201, %202, %203 in 0 : vector<1x64xf32>, vector<1x64xf32>, vector<1x64xf32>, vector<1x64xf32>, vector<1x64xf32>, vector<1x64xf32>, vector<1x64xf32>, vector<1x64xf32> -> vector<8x64xf32>
    %205 = vector.extract_strided_slice %188 {offsets = [1, 0], sizes = [1, 64], strides = [1, 1]} : vector<2x64xf32> to vector<1x64xf32>
    %206 = vector.extract_strided_slice %189 {offsets = [1, 0], sizes = [1, 64], strides = [1, 1]} : vector<2x64xf32> to vector<1x64xf32>
    %207 = vector.extract_strided_slice %190 {offsets = [1, 0], sizes = [1, 64], strides = [1, 1]} : vector<2x64xf32> to vector<1x64xf32>
    %208 = vector.extract_strided_slice %191 {offsets = [1, 0], sizes = [1, 64], strides = [1, 1]} : vector<2x64xf32> to vector<1x64xf32>
    %209 = vector.extract_strided_slice %192 {offsets = [1, 0], sizes = [1, 64], strides = [1, 1]} : vector<2x64xf32> to vector<1x64xf32>
    %210 = vector.extract_strided_slice %193 {offsets = [1, 0], sizes = [1, 64], strides = [1, 1]} : vector<2x64xf32> to vector<1x64xf32>
    %211 = vector.extract_strided_slice %194 {offsets = [1, 0], sizes = [1, 64], strides = [1, 1]} : vector<2x64xf32> to vector<1x64xf32>
    %212 = vector.extract_strided_slice %195 {offsets = [1, 0], sizes = [1, 64], strides = [1, 1]} : vector<2x64xf32> to vector<1x64xf32>
    %213 = tpu.concatenate %205, %206, %207, %208, %209, %210, %211, %212 in 0 : vector<1x64xf32>, vector<1x64xf32>, vector<1x64xf32>, vector<1x64xf32>, vector<1x64xf32>, vector<1x64xf32>, vector<1x64xf32>, vector<1x64xf32> -> vector<8x64xf32>
    %214 = tpu.concatenate %204, %213 in 0 : vector<8x64xf32>, vector<8x64xf32> -> vector<16x64xf32>
    %c0_23 = arith.constant 0 : index
    %c0_24 = arith.constant 0 : index
    %215 = vector.load %arg2[%c0_23, %c0_24] : memref<168x32xf32, #tpu.memory_space<vmem>>, vector<64x32xf32>
    %c64 = arith.constant 64 : index
    %c0_25 = arith.constant 0 : index
    %216 = vector.load %arg2[%c64, %c0_25] : memref<168x32xf32, #tpu.memory_space<vmem>>, vector<1x32xf32>
    %c72 = arith.constant 72 : index
    %c0_26 = arith.constant 0 : index
    %217 = vector.load %arg2[%c72, %c0_26] : memref<168x32xf32, #tpu.memory_space<vmem>>, vector<32x32xf32>
    %c104 = arith.constant 104 : index
    %c0_27 = arith.constant 0 : index
    %218 = vector.load %arg2[%c104, %c0_27] : memref<168x32xf32, #tpu.memory_space<vmem>>, vector<1x32xf32>
    %cst_28 = arith.constant dense<0.000000e+00> : vector<16x32xf32>
    %219 = tpu.matmul %214, %215, %cst_28 {dimension_numbers = #tpu.dot_dimension_numbers<[1], [0], [0], [1], [0, 0, 1, 1], [], []>} : vector<16x64xf32>, vector<64x32xf32>, vector<16x32xf32> -> vector<16x32xf32>
    %220 = vector.broadcast %216 : vector<1x32xf32> to vector<16x32xf32>
    %221 = arith.addf %219, %220 : vector<16x32xf32>
    %222 = math.tanh %221 : vector<16x32xf32>
    %cst_29 = arith.constant dense<0.000000e+00> : vector<16x32xf32>
    %223 = tpu.matmul %222, %217, %cst_29 {dimension_numbers = #tpu.dot_dimension_numbers<[1], [0], [0], [1], [0, 0, 1, 1], [], []>} : vector<16x32xf32>, vector<32x32xf32>, vector<16x32xf32> -> vector<16x32xf32>
    %224 = vector.broadcast %218 : vector<1x32xf32> to vector<16x32xf32>
    %225 = arith.addf %223, %224 : vector<16x32xf32>
    %226 = vector.extract_strided_slice %225 {offsets = [0, 0], sizes = [16, 8], strides = [1, 1]} : vector<16x32xf32> to vector<16x8xf32>
    %227 = vector.extract_strided_slice %226 {offsets = [0, 0], sizes = [8, 8], strides = [1, 1]} : vector<16x8xf32> to vector<8x8xf32>
    %228 = tpu.transpose %227, [1, 0] : vector<8x8xf32> -> vector<8x8xf32>
    %cst_30 = arith.constant dense<0xFF800000> : vector<8xf32>
    %229 = vector.multi_reduction <maximumf>, %228, %cst_30 [1] : vector<8x8xf32> to vector<8xf32>
    %230 = vector.shape_cast %229 : vector<8xf32> to vector<8x1xf32>
    %231 = vector.broadcast %230 : vector<8x1xf32> to vector<8x8xf32>
    %232 = arith.subf %228, %231 : vector<8x8xf32>
    %233 = math.exp %232 : vector<8x8xf32>
    %cst_31 = arith.constant dense<0.000000e+00> : vector<8xf32>
    %234 = vector.multi_reduction <add>, %233, %cst_31 [1] : vector<8x8xf32> to vector<8xf32>
    %235 = vector.shape_cast %234 : vector<8xf32> to vector<8x1xf32>
    %236 = vector.broadcast %235 : vector<8x1xf32> to vector<8x8xf32>
    %237 = arith.divf %233, %236 : vector<8x8xf32>
    %238 = vector.shape_cast %237 : vector<8x8xf32> to vector<1x8x8xf32>
    %cst_32 = arith.constant dense<0.000000e+00> : vector<8x64xf32>
    %239 = tpu.matmul %237, %204, %cst_32 {dimension_numbers = #tpu.dot_dimension_numbers<[1], [0], [0], [1], [0, 0, 1, 1], [], []>} : vector<8x8xf32>, vector<8x64xf32>, vector<8x64xf32> -> vector<8x64xf32>
    %cst_33 = arith.constant dense<0xFF800000> : vector<8xf32>
    %240 = vector.multi_reduction <maximumf>, %239, %cst_33 [1] : vector<8x64xf32> to vector<8xf32>
    %241 = vector.shape_cast %240 : vector<8xf32> to vector<1x8xf32>
    %242 = vector.extract_strided_slice %226 {offsets = [8, 0], sizes = [8, 8], strides = [1, 1]} : vector<16x8xf32> to vector<8x8xf32>
    %243 = tpu.transpose %242, [1, 0] : vector<8x8xf32> -> vector<8x8xf32>
    %cst_34 = arith.constant dense<0xFF800000> : vector<8xf32>
    %244 = vector.multi_reduction <maximumf>, %243, %cst_34 [1] : vector<8x8xf32> to vector<8xf32>
    %245 = vector.shape_cast %244 : vector<8xf32> to vector<8x1xf32>
    %246 = vector.broadcast %245 : vector<8x1xf32> to vector<8x8xf32>
    %247 = arith.subf %243, %246 : vector<8x8xf32>
    %248 = math.exp %247 : vector<8x8xf32>
    %cst_35 = arith.constant dense<0.000000e+00> : vector<8xf32>
    %249 = vector.multi_reduction <add>, %248, %cst_35 [1] : vector<8x8xf32> to vector<8xf32>
    %250 = vector.shape_cast %249 : vector<8xf32> to vector<8x1xf32>
    %251 = vector.broadcast %250 : vector<8x1xf32> to vector<8x8xf32>
    %252 = arith.divf %248, %251 : vector<8x8xf32>
    %253 = vector.shape_cast %252 : vector<8x8xf32> to vector<1x8x8xf32>
    %cst_36 = arith.constant dense<0.000000e+00> : vector<8x64xf32>
    %254 = tpu.matmul %252, %213, %cst_36 {dimension_numbers = #tpu.dot_dimension_numbers<[1], [0], [0], [1], [0, 0, 1, 1], [], []>} : vector<8x8xf32>, vector<8x64xf32>, vector<8x64xf32> -> vector<8x64xf32>
    %cst_37 = arith.constant dense<0xFF800000> : vector<8xf32>
    %255 = vector.multi_reduction <maximumf>, %254, %cst_37 [1] : vector<8x64xf32> to vector<8xf32>
    %256 = vector.shape_cast %255 : vector<8xf32> to vector<1x8xf32>
    %257 = tpu.concatenate %238, %253 in 0 : vector<1x8x8xf32>, vector<1x8x8xf32> -> vector<2x8x8xf32>
    %c0_38 = arith.constant 0 : index
    %c0_39 = arith.constant 0 : index
    %c0_40 = arith.constant 0 : index
    %258 = vector.load %arg4[%c0_38, %c0_39, %c0_40] : memref<2x8x8xf32, #tpu.memory_space<vmem>>, vector<2x8x8xf32>
    tpu.vector_store %arg4[%c0_38, %c0_39, %c0_40], %257 {strides = array<i32>} : memref<2x8x8xf32, #tpu.memory_space<vmem>>, vector<2x8x8xf32>,
    %259 = tpu.concatenate %241, %256 in 0 : vector<1x8xf32>, vector<1x8xf32> -> vector<2x8xf32>
    %c112 = arith.constant 112 : index
    %c0_41 = arith.constant 0 : index
    %260 = vector.load %arg2[%c112, %c0_41] : memref<168x32xf32, #tpu.memory_space<vmem>>, vector<8x32xf32>
    %c120 = arith.constant 120 : index
    %c0_42 = arith.constant 0 : index
    %261 = vector.load %arg2[%c120, %c0_42] : memref<168x32xf32, #tpu.memory_space<vmem>>, vector<1x32xf32>
    %c128_43 = arith.constant 128 : index
    %c0_44 = arith.constant 0 : index
    %262 = vector.load %arg2[%c128_43, %c0_44] : memref<168x32xf32, #tpu.memory_space<vmem>>, vector<32x32xf32>
    %c160 = arith.constant 160 : index
    %c0_45 = arith.constant 0 : index
    %263 = vector.load %arg2[%c160, %c0_45] : memref<168x32xf32, #tpu.memory_space<vmem>>, vector<1x32xf32>
    %cst_46 = arith.constant dense<0.000000e+00> : vector<2x32xf32>
    %264 = tpu.matmul %259, %260, %cst_46 {dimension_numbers = #tpu.dot_dimension_numbers<[1], [0], [0], [1], [0, 0, 1, 1], [], []>} : vector<2x8xf32>, vector<8x32xf32>, vector<2x32xf32> -> vector<2x32xf32>
    %265 = vector.broadcast %261 : vector<1x32xf32> to vector<2x32xf32>
    %266 = arith.addf %264, %265 : vector<2x32xf32>
    %cst_47 = arith.constant 0.000000e+00 : f32
    %267 = vector.broadcast %cst_47 : f32 to vector<2x32xf32>
    %268 = arith.maximumf %266, %267 : vector<2x32xf32>
    %cst_48 = arith.constant dense<0.000000e+00> : vector<2x32xf32>
    %269 = tpu.matmul %268, %262, %cst_48 {dimension_numbers = #tpu.dot_dimension_numbers<[1], [0], [0], [1], [0, 0, 1, 1], [], []>} : vector<2x32xf32>, vector<32x32xf32>, vector<2x32xf32> -> vector<2x32xf32>
    %270 = vector.broadcast %263 : vector<1x32xf32> to vector<2x32xf32>
    %271 = arith.addf %269, %270 : vector<2x32xf32>
    %272 = vector.extract_strided_slice %271 {offsets = [0, 0], sizes = [2, 4], strides = [1, 1]} : vector<2x32xf32> to vector<2x4xf32>
    %cst_49 = arith.constant dense<0xFF800000> : vector<2xf32>
    %273 = vector.multi_reduction <maximumf>, %272, %cst_49 [1] : vector<2x4xf32> to vector<2xf32>
    %274 = vector.shape_cast %273 : vector<2xf32> to vector<2x1xf32>
    %275 = vector.broadcast %274 : vector<2x1xf32> to vector<2x4xf32>
    %276 = arith.subf %272, %275 : vector<2x4xf32>
    %277 = math.exp %276 : vector<2x4xf32>
    %cst_50 = arith.constant dense<0.000000e+00> : vector<2xf32>
    %278 = vector.multi_reduction <add>, %277, %cst_50 [1] : vector<2x4xf32> to vector<2xf32>
    %279 = vector.shape_cast %278 : vector<2xf32> to vector<2x1xf32>
    %280 = vector.broadcast %279 : vector<2x1xf32> to vector<2x4xf32>
    %281 = arith.divf %277, %280 : vector<2x4xf32>
    %c0_51 = arith.constant 0 : index
    %c0_52 = arith.constant 0 : index
    %282 = vector.load %arg3[%c0_51, %c0_52] : memref<2x4xf32, #tpu.memory_space<vmem>>, vector<2x4xf32>
    tpu.vector_store %arg3[%c0_51, %c0_52], %281 {strides = array<i32>} : memref<2x4xf32, #tpu.memory_space<vmem>>, vector<2x4xf32>,
    return
  }
}

</mosaic_0001>

<llo_original>
// kernel: prm_forward.1
$region0: #{prm_forward.1}
  #allocation0 [shape = 'u32[]', space=smem, size = 0x4, offset = 0x4, fixed_abs, tag = 'smem constant byte address 0x4 - core index']
  #allocation1 [shape = 'u32[144,128]{1,0:T(1,128)}', space=vmem, size = 0x12000, scoped, tag = 'internal scratch']
  %s0 = inlined_call_operand.vmem [shape: s32[16,1], index: 0, kind: input, shape index: {}]
  %s1 = inlined_call_operand.hbm [shape: f32[200,256], index: 1, kind: input, shape index: {}]
  %s2 = inlined_call_operand.vmem [shape: f32[168,32], index: 2, kind: input, shape index: {}]
  %s3 = inlined_call_operand.hbm [shape: f32[2,4], index: 3, kind: output, shape index: {0}]
  %s4 = inlined_call_operand.hbm [shape: f32[2,8,8], index: 4, kind: output, shape index: {1}]
  %5 = xla_tuple %s3, %s4
  %s6 = sld [smem:[#allocation0]]
  $region34: #{prm_forward.1} parent=0
    _
  %s8 = ssub.s32 1, %s6
  %s9 = scalar_select 0, %s8, %s6
  $region1: #{prm_forward.1} parent=0
    #allocation2 [shape = 'u8[204800]{0}', space=vmem, size = 0x32000, scoped, tag = 'input window, operand 1, single buffered']
    #allocation3 [shape = 's32[1]{0}', space=sflag, size = 0x4, scoped, tag = 'scoped memory for prm_forward.1']
    #allocation4 [shape = 's32[1]{0}', space=sflag, size = 0x4, scoped, tag = 'scoped memory for prm_forward.1']
    #allocation5 [shape = 'u8[1024]{0}', space=vmem, size = 0x400, scoped, tag = 'output window, operand 0, single buffered']
    #allocation6 [shape = 'u8[8192]{0}', space=vmem, size = 0x2000, scoped, tag = 'output window, operand 1, single buffered']
    #allocation7 [shape = 's32[1]{0}', space=sflag, size = 0x4, scoped, tag = 'scoped memory for prm_forward.1']
    %10 = vsyncpa [#allocation3], 0
    %11 = vsyncpa [#allocation4], 0
    %12 = vsyncpa [#allocation7], 0
    // Predicated region
    $region2: #{prm_forward.1} parent=1 // pred_check
      _
    $region3: #{prm_forward.1} parent=1 // pred_check_branch
      %14 = sbr.rel (0) target = $region5
    $region4: #{prm_forward.1} parent=1 // pred_region
      _
    $region5: #{prm_forward.1} parent=1 // pred_fallthru
      _
    // Predicated region
    $region6: #{prm_forward.1} parent=1 // pred_check
      _
    $region7: #{prm_forward.1} parent=1 // pred_check_branch
      %16 = sbr.rel (0) target = $region9
    $region8: #{prm_forward.1} parent=1 // pred_region
      %s18 = ssub.s32 6400, 6400
      %19 = vsyncadd [#allocation3], %s18
      %s20 = sshll.u32 [#allocation2], 4
      %s21 = int_to_ptr.vmem [resolvable:$true] %s20
      %26 = dma.hbm_to_vmem [thread:$0]  %s1, 6400, %s21, [#allocation3], 256, 256, 16
    $region9: #{prm_forward.1} parent=1 // pred_fallthru
      _
    // Predicated region
    $region10: #{prm_forward.1} parent=1 // pred_check
      _
    $region11: #{prm_forward.1} parent=1 // pred_check_branch
      %28 = sbr.rel (0) target = $region13
    $region12: #{prm_forward.1} parent=1 // pred_region
      _
    $region13: #{prm_forward.1} parent=1 // pred_fallthru
      _
    // Predicated region
    $region14: #{prm_forward.1} parent=1 // pred_check
      _
    $region15: #{prm_forward.1} parent=1 // pred_check_branch
      %30 = sbr.rel (0) target = $region17
    $region16: #{prm_forward.1} parent=1 // pred_region
      %31 = dma.done [#allocation3], 6400
    $region17: #{prm_forward.1} parent=1 // pred_fallthru
      _
    %v32 = vld [vmem:[%s0] sm:$0xff]
    %v33 = vld [vmem:[%s0 + $0x8] sm:$0xff]
    %v34 = vlaneseq
    %v35 = vand.u32 %v34, 127
    %36 = vset.pattern.permute.xlu0 0
    %37 = vperm.xlu0 %36, %v32
    %v38 = vpop.permute.xlu0 %37
    %39 = vset.pattern.permute.xlu0 0
    %40 = vperm.xlu0 %39, %v33
    %v41 = vpop.permute.xlu0 %40
    %vm42 = vcmp.eq.s32.totalorder %v38, %v35
    %vm43 = vcmp.eq.s32.totalorder %v41, %v35
    %v44 = vsel %vm42, 1, 0
    %v45 = vsel %vm43, 1, 0
    %v46 = vcvt.s32.f32 %v44
    %v47 = vcvt.s32.f32 %v45
    %v48 = vld [vmem:[#allocation2] sm:$0xff]
    %v49 = vld [vmem:[#allocation2 + $0x8] sm:$0xff]
    %v50 = vld [vmem:[#allocation2 + $0x10] sm:$0xff]
    %v51 = vld [vmem:[#allocation2 + $0x18] sm:$0xff]
    %v52 = vld [vmem:[#allocation2 + $0x20] sm:$0xff]
    %v53 = vld [vmem:[#allocation2 + $0x28] sm:$0xff]
    %v54 = vld [vmem:[#allocation2 + $0x30] sm:$0xff]
    %v55 = vld [vmem:[#allocation2 + $0x38] sm:$0xff]
    %v56 = vld [vmem:[#allocation2 + $0x40] sm:$0xff]
    %v57 = vld [vmem:[#allocation2 + $0x48] sm:$0xff]
    %v58 = vld [vmem:[#allocation2 + $0x50] sm:$0xff]
    %v59 = vld [vmem:[#allocation2 + $0x58] sm:$0xff]
    %v60 = vld [vmem:[#allocation2 + $0x60] sm:$0xff]
    %v61 = vld [vmem:[#allocation2 + $0x68] sm:$0xff]
    %v62 = vld [vmem:[#allocation2 + $0x70] sm:$0xff]
    %v63 = vld [vmem:[#allocation2 + $0x78] sm:$0xff]
    %v64 = vld [vmem:[#allocation2 + $0x80] sm:$0xff]
    %v65 = vld [vmem:[#allocation2 + $0x88] sm:$0xff]
    %v66 = vld [vmem:[#allocation2 + $0x90] sm:$0xff]
    %v67 = vld [vmem:[#allocation2 + $0x98] sm:$0xff]
    %v68 = vld [vmem:[#allocation2 + $0xa0] sm:$0xff]
    %v69 = vld [vmem:[#allocation2 + $0xa8] sm:$0xff]
    %v70 = vld [vmem:[#allocation2 + $0xb0] sm:$0xff]
    %v71 = vld [vmem:[#allocation2 + $0xb8] sm:$0xff]
    %v72 = vld [vmem:[#allocation2 + $0xc0] sm:$0xff]
    %v73 = vld [vmem:[#allocation2 + $0xc8] sm:$0xff]
    %v74 = vld [vmem:[#allocation2 + $0xd0] sm:$0xff]
    %v75 = vld [vmem:[#allocation2 + $0xd8] sm:$0xff]
    %v76 = vld [vmem:[#allocation2 + $0xe0] sm:$0xff]
    %v77 = vld [vmem:[#allocation2 + $0xe8] sm:$0xff]
    %v78 = vld [vmem:[#allocation2 + $0xf0] sm:$0xff]
    %v79 = vld [vmem:[#allocation2 + $0xf8] sm:$0xff]
    %s80 = scalar_lea.vmem [#allocation2], 384
    %v81 = vld [vmem:[%s80] ss:$8 sm:$0x3]
    %v83 = vlaneseq
    %v84 = vshrl.u32 %v83, 7
    %v85 = vsub.s32 0, %v84
    %v86 = vrot.slane %v81, %v85
    %v87 = vlaneseq
    %v88 = vshrl.u32 %v87, 7
    %v89 = vsub.s32 1, %v88
    %v90 = vrot.slane %v81, %v89
    %93 = vmatprep.subr.mxu0 %v79
    %94 = vmatpush1.msra.mxu0 %v78
    %95 = vmatprep.subr.mxu0 %v77
    %96 = vmatpush1.msra.mxu0 %v76
    %97 = vmatprep.subr.mxu0 %v75
    %98 = vmatpush1.msra.mxu0 %v74
    %99 = vmatprep.subr.mxu0 %v73
    %100 = vmatpush1.msra.mxu0 %v72
    %101 = vmatprep.subr.mxu0 %v71
    %102 = vmatpush1.msra.mxu0 %v70
    %103 = vmatprep.subr.mxu0 %v69
    %104 = vmatpush1.msra.mxu0 %v68
    %105 = vmatprep.subr.mxu0 %v67
    %106 = vmatpush1.msra.mxu0 %v66
    %107 = vmatprep.subr.mxu0 %v65
    %108 = vmatpush1.msra.mxu0 %v64
    %109 = vmatprep.subr.mxu0 %v63
    %110 = vmatpush1.msra.mxu0 %v62
    %111 = vmatprep.subr.mxu0 %v61
    %112 = vmatpush1.msra.mxu0 %v60
    %113 = vmatprep.subr.mxu0 %v59
    %114 = vmatpush1.msra.mxu0 %v58
    %115 = vmatprep.subr.mxu0 %v57
    %116 = vmatpush1.msra.mxu0 %v56
    %117 = vmatprep.subr.mxu0 %v55
    %118 = vmatpush1.msra.mxu0 %v54
    %119 = vmatprep.subr.mxu0 %v53
    %120 = vmatpush1.msra.mxu0 %v52
    %121 = vmatprep.subr.mxu0 %v51
    %122 = vmatpush1.msra.mxu0 %v50
    %123 = vmatprep.subr.mxu0 %v49
    %124 = vmatpush1.msra.mxu0 %v48
    %125 = vmatprep.subr.mxu0 0.0
    %126 = vmatpush2.msra.mxu0 0.0
    %127 = vmatprep.subr.mxu0 0.0
    %128 = vmatpush2.msra.mxu0 0.0
    %129 = vmatprep.subr.mxu0 0.0
    %130 = vmatpush2.msra.mxu0 0.0
    %131 = vmatprep.subr.mxu0 0.0
    %132 = vmatpush2.msra.mxu0 0.0
    %133 = vmatprep.subr.mxu0 0.0
    %134 = vmatpush2.msra.mxu0 0.0
    %135 = vmatprep.subr.mxu0 0.0
    %136 = vmatpush2.msra.mxu0 0.0
    %137 = vmatprep.subr.mxu0 0.0
    %138 = vmatpush2.msra.mxu0 0.0
    %139 = vmatprep.subr.mxu0 0.0
    %140 = vmatpush2.msra.mxu0 0.0
    %141 = vmatprep.subr.mxu0 0.0
    %142 = vmatpush2.msra.mxu0 0.0
    %143 = vmatprep.subr.mxu0 0.0
    %144 = vmatpush2.msra.mxu0 0.0
    %145 = vmatprep.subr.mxu0 0.0
    %146 = vmatpush2.msra.mxu0 0.0
    %147 = vmatprep.subr.mxu0 0.0
    %148 = vmatpush2.msra.mxu0 0.0
    %149 = vmatprep.subr.mxu0 0.0
    %150 = vmatpush2.msra.mxu0 0.0
    %151 = vmatprep.subr.mxu0 0.0
    %152 = vmatpush2.msra.mxu0 0.0
    %153 = vmatprep.subr.mxu0 0.0
    %154 = vmatpush2.msra.mxu0 0.0
    %155 = vmatprep.subr.mxu0 0.0
    %156 = vmatpush2.msra.mxu0 0.0
    %157 = vmatprep.mubr.f32.mxu0 0.0
    %158 = vmatmul.mubr.f32.gmra.mxu0 %v46
    %v159 = vpop.f32.mrf.mxu0
    %v160 = vadd.f32 %v86, %v159
    %v161 = vpop.f32.mrf.mxu0
    %v162 = vadd.f32 %v90, %v161
    %163 = vmatprep.mubr.f32.mxu0 0.0
    %164 = vmatmul.mubr.f32.gmra.mxu0 %v47
    %v165 = vpop.f32.mrf.mxu0
    %v166 = vadd.f32 %v86, %v165
    %v167 = vpop.f32.mrf.mxu0
    %v168 = vadd.f32 %v90, %v167
    %169 = vdwg.mxu0
    %v170 = vld [vmem:[#allocation2 + $0x100] sm:$0xff]
    %v171 = vld [vmem:[#allocation2 + $0x108] sm:$0xff]
    %v172 = vld [vmem:[#allocation2 + $0x110] sm:$0xff]
    %v173 = vld [vmem:[#allocation2 + $0x118] sm:$0xff]
    %v174 = vld [vmem:[#allocation2 + $0x120] sm:$0xff]
    %v175 = vld [vmem:[#allocation2 + $0x128] sm:$0xff]
    %v176 = vld [vmem:[#allocation2 + $0x130] sm:$0xff]
    %v177 = vld [vmem:[#allocation2 + $0x138] sm:$0xff]
    %v178 = vld [vmem:[#allocation2 + $0x140] sm:$0xff]
    %v179 = vld [vmem:[#allocation2 + $0x148] sm:$0xff]
    %v180 = vld [vmem:[#allocation2 + $0x150] sm:$0xff]
    %v181 = vld [vmem:[#allocation2 + $0x158] sm:$0xff]
    %v182 = vld [vmem:[#allocation2 + $0x160] sm:$0xff]
    %v183 = vld [vmem:[#allocation2 + $0x168] sm:$0xff]
    %v184 = vld [vmem:[#allocation2 + $0x170] sm:$0xff]
    %v185 = vld [vmem:[#allocation2 + $0x178] sm:$0xff]
    %v186 = vadd.s32 %v35, 128
    %vm187 = vcmp.ge.s32.totalorder %v35, 192
    %vm188 = vcmp.ge.s32.totalorder %v186, 192
    %v189 = vsel %vm187, 1.0, 0.5
    %v190 = vsel %vm188, 1.0, 0.5
    %v191 = vsel %vm187, 0.0, 0.5
    %v192 = vsel %vm188, 0.0, 0.5
    %vm193 = vcmp.lt.s32.totalorder %v35, 0
    %v194 = vsub.s32 0, %v35
    %v195 = vsel %vm193, %v194, %v35
    %v196 = vshrl.u32 %v195, 6
    %v197 = vand.u32 %v195, 63
    %v198 = vsub.s32 0, %v197
    %v199 = vsel %vm193, %v198, %v197
    %vm200 = vcmp.lt.s32.totalorder %v186, 0
    %v201 = vsub.s32 0, %v186
    %v202 = vsel %vm200, %v201, %v186
    %v203 = vshrl.u32 %v202, 6
    %v204 = vand.u32 %v202, 63
    %v205 = vsub.s32 0, %v204
    %v206 = vsel %vm200, %v205, %v204
    %vm207 = vcmp.ne.s32.totalorder %v199, 0
    %vm208 = vcmp.ne.s32.totalorder %v206, 0
    %vm209 = vcmp.lt.s32.totalorder %v199, 0
    %vm210 = vcmp.lt.s32.totalorder %v206, 0
    %vm211 = vmand %vm209, %vm207
    %vm212 = vmand %vm210, %vm208
    %v213 = vadd.s32 %v199, 64
    %v214 = vadd.s32 %v206, 64
    %v215 = vsel %vm211, %v213, %v199
    %v216 = vsel %vm212, %v214, %v206
    %vm217 = vcmp.lt.s32.totalorder %v215, 32
    %vm218 = vcmp.lt.s32.totalorder %v216, 32
    %vm219 = vcmp.lt.s32.totalorder %v35, 32
    %v222 = vrot.slane %v166, 6
    %v223 = vrot.slane %v168, 6
    %v226 = vsel %vm217, %v160, %v222
    %v227 = vsel %vm218, %v162, %v223
    %vm228 = vcmask 523264
    %v230 = vsel %vm228, 0.0, 0
    %232 = vmatprep.subr.mxu0 0.0
    %233 = vmatpush1.msra.mxu0 0.0
    %234 = vmatprep.subr.mxu0 0.0
    %235 = vmatpush1.msra.mxu0 0.0
    %236 = vmatprep.subr.mxu0 0.0
    %237 = vmatpush1.msra.mxu0 0.0
    %238 = vmatprep.subr.mxu0 0.0
    %239 = vmatpush1.msra.mxu0 0.0
    %240 = vmatprep.subr.mxu0 0.0
    %241 = vmatpush1.msra.mxu0 0.0
    %242 = vmatprep.subr.mxu0 0.0
    %243 = vmatpush1.msra.mxu0 0.0
    %244 = vmatprep.subr.mxu0 0.0
    %245 = vmatpush1.msra.mxu0 0.0
    %246 = vmatprep.subr.mxu0 0.0
    %247 = vmatpush1.msra.mxu0 0.0
    %248 = vmatprep.subr.mxu0 %v185
    %249 = vmatpush1.msra.mxu0 %v184
    %250 = vmatprep.subr.mxu0 %v183
    %251 = vmatpush1.msra.mxu0 %v182
    %252 = vmatprep.subr.mxu0 %v181
    %253 = vmatpush1.msra.mxu0 %v180
    %254 = vmatprep.subr.mxu0 %v179
    %255 = vmatpush1.msra.mxu0 %v178
    %256 = vmatprep.subr.mxu0 %v177
    %257 = vmatpush1.msra.mxu0 %v176
    %258 = vmatprep.subr.mxu0 %v175
    %259 = vmatpush1.msra.mxu0 %v174
    %260 = vmatprep.subr.mxu0 %v173
    %261 = vmatpush1.msra.mxu0 %v172
    %262 = vmatprep.subr.mxu0 %v171
    %263 = vmatpush1.msra.mxu0 %v170
    %264 = vmatprep.subr.mxu0 0.0
    %265 = vmatpush2.msra.mxu0 0.0
    %266 = vmatprep.subr.mxu0 0.0
    %267 = vmatpush2.msra.mxu0 0.0
    %268 = vmatprep.subr.mxu0 0.0
    %269 = vmatpush2.msra.mxu0 0.0
    %270 = vmatprep.subr.mxu0 0.0
    %271 = vmatpush2.msra.mxu0 0.0
    %272 = vmatprep.subr.mxu0 0.0
    %273 = vmatpush2.msra.mxu0 0.0
    %274 = vmatprep.subr.mxu0 0.0
    %275 = vmatpush2.msra.mxu0 0.0
    %276 = vmatprep.subr.mxu0 0.0
    %277 = vmatpush2.msra.mxu0 0.0
    %278 = vmatprep.subr.mxu0 0.0
    %279 = vmatpush2.msra.mxu0 0.0
    %280 = vmatprep.subr.mxu0 0.0
    %281 = vmatpush2.msra.mxu0 0.0
    %282 = vmatprep.subr.mxu0 0.0
    %283 = vmatpush2.msra.mxu0 0.0
    %284 = vmatprep.subr.mxu0 0.0
    %285 = vmatpush2.msra.mxu0 0.0
    %286 = vmatprep.subr.mxu0 0.0
    %287 = vmatpush2.msra.mxu0 0.0
    %288 = vmatprep.subr.mxu0 0.0
    %289 = vmatpush2.msra.mxu0 0.0
    %290 = vmatprep.subr.mxu0 0.0
    %291 = vmatpush2.msra.mxu0 0.0
    %292 = vmatprep.subr.mxu0 0.0
    %293 = vmatpush2.msra.mxu0 0.0
    %294 = vmatprep.subr.mxu0 0.0
    %295 = vmatpush2.msra.mxu0 0.0
    %296 = vmatprep.mubr.f32.mxu0 0.0
    %297 = vmatmul.mubr.f32.gmra.mxu0 %v230
    %v298 = vpop.f32.mrf.mxu0
    %v299 = vadd.f32 0.0, %v298
    %v300 = vpop.f32.mrf.mxu0
    %v301 = vadd.f32 0.0, %v300
    %302 = vdwg.mxu0
    %v303 = vadd.f32 %v226, %v299
    %v304 = vadd.f32 %v227, %v301
    %v305 = vmul.f32 %v189, %v303
    %v306 = vmul.f32 %v190, %v304
    %v307 = vtanh.pop %v305
    %v308 = vtanh.pop %v306
    %v309 = vmul.f32 %v189, %v307
    %v310 = vmul.f32 %v190, %v308
    %v311 = vadd.f32 %v309, %v191
    %v312 = vadd.f32 %v310, %v192
    %v313 = vmul.f32 %v311, 0.0
    %315 = vrot.lane.b32.xlu0 %v312, 64
    %v316 = vpop.permute.xlu0 %315
    %v318 = vmul.f32 %v311, %v316
    %320 = vrot.lane.b32.xlu0 %v318, 64
    %v321 = vpop.permute.xlu0 %320
    %v323 = vadd.f32 %v313, %v321
    %v324 = vtanh.pop %v323
    %326 = vrot.lane.b32.xlu0 %v324, 64
    %v327 = vpop.permute.xlu0 %326
    %v329 = vmul.f32 %v312, %v327
    %v330 = vrot.slane %v166, 2
    %v331 = vrot.slane %v168, 2
    %v334 = vsel %vm217, %v160, %v330
    %v335 = vsel %vm218, %v162, %v331
    %v337 = vsel %vm228, %v329, 0
    %339 = vmatprep.subr.mxu0 0.0
    %340 = vmatpush1.msra.mxu0 0.0
    %341 = vmatprep.subr.mxu0 0.0
    %342 = vmatpush1.msra.mxu0 0.0
    %343 = vmatprep.subr.mxu0 0.0
    %344 = vmatpush1.msra.mxu0 0.0
    %345 = vmatprep.subr.mxu0 0.0
    %346 = vmatpush1.msra.mxu0 0.0
    %347 = vmatprep.subr.mxu0 0.0
    %348 = vmatpush1.msra.mxu0 0.0
    %349 = vmatprep.subr.mxu0 0.0
    %350 = vmatpush1.msra.mxu0 0.0
    %351 = vmatprep.subr.mxu0 0.0
    %352 = vmatpush1.msra.mxu0 0.0
    %353 = vmatprep.subr.mxu0 0.0
    %354 = vmatpush1.msra.mxu0 0.0
    %355 = vmatprep.subr.mxu0 %v185
    %356 = vmatpush1.msra.mxu0 %v184
    %357 = vmatprep.subr.mxu0 %v183
    %358 = vmatpush1.msra.mxu0 %v182
    %359 = vmatprep.subr.mxu0 %v181
    %360 = vmatpush1.msra.mxu0 %v180
    %361 = vmatprep.subr.mxu0 %v179
    %362 = vmatpush1.msra.mxu0 %v178
    %363 = vmatprep.subr.mxu0 %v177
    %364 = vmatpush1.msra.mxu0 %v176
    %365 = vmatprep.subr.mxu0 %v175
    %366 = vmatpush1.msra.mxu0 %v174
    %367 = vmatprep.subr.mxu0 %v173
    %368 = vmatpush1.msra.mxu0 %v172
    %369 = vmatprep.subr.mxu0 %v171
    %370 = vmatpush1.msra.mxu0 %v170
    %371 = vmatprep.subr.mxu0 0.0
    %372 = vmatpush2.msra.mxu0 0.0
    %373 = vmatprep.subr.mxu0 0.0
    %374 = vmatpush2.msra.mxu0 0.0
    %375 = vmatprep.subr.mxu0 0.0
    %376 = vmatpush2.msra.mxu0 0.0
    %377 = vmatprep.subr.mxu0 0.0
    %378 = vmatpush2.msra.mxu0 0.0
    %379 = vmatprep.subr.mxu0 0.0
    %380 = vmatpush2.msra.mxu0 0.0
    %381 = vmatprep.subr.mxu0 0.0
    %382 = vmatpush2.msra.mxu0 0.0
    %383 = vmatprep.subr.mxu0 0.0
    %384 = vmatpush2.msra.mxu0 0.0
    %385 = vmatprep.subr.mxu0 0.0
    %386 = vmatpush2.msra.mxu0 0.0
    %387 = vmatprep.subr.mxu0 0.0
    %388 = vmatpush2.msra.mxu0 0.0
    %389 = vmatprep.subr.mxu0 0.0
    %390 = vmatpush2.msra.mxu0 0.0
    %391 = vmatprep.subr.mxu0 0.0
    %392 = vmatpush2.msra.mxu0 0.0
    %393 = vmatprep.subr.mxu0 0.0
    %394 = vmatpush2.msra.mxu0 0.0
    %395 = vmatprep.subr.mxu0 0.0
    %396 = vmatpush2.msra.mxu0 0.0
    %397 = vmatprep.subr.mxu0 0.0
    %398 = vmatpush2.msra.mxu0 0.0
    %399 = vmatprep.subr.mxu0 0.0
    %400 = vmatpush2.msra.mxu0 0.0
    %401 = vmatprep.subr.mxu0 0.0
    %402 = vmatpush2.msra.mxu0 0.0
    %403 = vmatprep.mubr.f32.mxu0 0.0
    %404 = vmatmul.mubr.f32.gmra.mxu0 %v337
    %v405 = vpop.f32.mrf.mxu0
    %v406 = vadd.f32 0.0, %v405
    %v407 = vpop.f32.mrf.mxu0
    %v408 = vadd.f32 0.0, %v407
    %409 = vdwg.mxu0
    %v412 = vrot.slane %v406, 6
    %v413 = vrot.slane %v408, 6
    %v416 = vadd.f32 %v334, %v412
    %v417 = vadd.f32 %v335, %v413
    %v418 = vmul.f32 %v189, %v416
    %v419 = vmul.f32 %v190, %v417
    %v420 = vtanh.pop %v418
    %v421 = vtanh.pop %v419
    %v422 = vmul.f32 %v189, %v420
    %v423 = vmul.f32 %v190, %v421
    %v424 = vadd.f32 %v422, %v191
    %v425 = vadd.f32 %v423, %v192
    %v427 = vrot.slane %v323, 6
    %v429 = vmul.f32 %v424, %v427
    %431 = vrot.lane.b32.xlu0 %v425, 64
    %v432 = vpop.permute.xlu0 %431
    %v434 = vmul.f32 %v424, %v432
    %436 = vrot.lane.b32.xlu0 %v434, 64
    %v437 = vpop.permute.xlu0 %436
    %v439 = vadd.f32 %v429, %v437
    %v440 = vtanh.pop %v439
    %442 = vrot.lane.b32.xlu0 %v440, 64
    %v443 = vpop.permute.xlu0 %442
    %v445 = vmul.f32 %v425, %v443
    %v447 = vrot.slane %v445, 2
    %v448 = vsel %vm228, %v447, 0
    %450 = vmatprep.subr.mxu0 0.0
    %451 = vmatpush1.msra.mxu0 0.0
    %452 = vmatprep.subr.mxu0 0.0
    %453 = vmatpush1.msra.mxu0 0.0
    %454 = vmatprep.subr.mxu0 0.0
    %455 = vmatpush1.msra.mxu0 0.0
    %456 = vmatprep.subr.mxu0 0.0
    %457 = vmatpush1.msra.mxu0 0.0
    %458 = vmatprep.subr.mxu0 0.0
    %459 = vmatpush1.msra.mxu0 0.0
    %460 = vmatprep.subr.mxu0 0.0
    %461 = vmatpush1.msra.mxu0 0.0
    %462 = vmatprep.subr.mxu0 0.0
    %463 = vmatpush1.msra.mxu0 0.0
    %464 = vmatprep.subr.mxu0 0.0
    %465 = vmatpush1.msra.mxu0 0.0
    %466 = vmatprep.subr.mxu0 %v185
    %467 = vmatpush1.msra.mxu0 %v184
    %468 = vmatprep.subr.mxu0 %v183
    %469 = vmatpush1.msra.mxu0 %v182
    %470 = vmatprep.subr.mxu0 %v181
    %471 = vmatpush1.msra.mxu0 %v180
    %472 = vmatprep.subr.mxu0 %v179
    %473 = vmatpush1.msra.mxu0 %v178
    %474 = vmatprep.subr.mxu0 %v177
    %475 = vmatpush1.msra.mxu0 %v176
    %476 = vmatprep.subr.mxu0 %v175
    %477 = vmatpush1.msra.mxu0 %v174
    %478 = vmatprep.subr.mxu0 %v173
    %479 = vmatpush1.msra.mxu0 %v172
    %480 = vmatprep.subr.mxu0 %v171
    %481 = vmatpush1.msra.mxu0 %v170
    %482 = vmatprep.subr.mxu0 0.0
    %483 = vmatpush2.msra.mxu0 0.0
    %484 = vmatprep.subr.mxu0 0.0
    %485 = vmatpush2.msra.mxu0 0.0
    %486 = vmatprep.subr.mxu0 0.0
    %487 = vmatpush2.msra.mxu0 0.0
    %488 = vmatprep.subr.mxu0 0.0
    %489 = vmatpush2.msra.mxu0 0.0
    %490 = vmatprep.subr.mxu0 0.0
    %491 = vmatpush2.msra.mxu0 0.0
    %492 = vmatprep.subr.mxu0 0.0
    %493 = vmatpush2.msra.mxu0 0.0
    %494 = vmatprep.subr.mxu0 0.0
    %495 = vmatpush2.msra.mxu0 0.0
    %496 = vmatprep.subr.mxu0 0.0
    %497 = vmatpush2.msra.mxu0 0.0
    %498 = vmatprep.subr.mxu0 0.0
    %499 = vmatpush2.msra.mxu0 0.0
    %500 = vmatprep.subr.mxu0 0.0
    %501 = vmatpush2.msra.mxu0 0.0
    %502 = vmatprep.subr.mxu0 0.0
    %503 = vmatpush2.msra.mxu0 0.0
    %504 = vmatprep.subr.mxu0 0.0
    %505 = vmatpush2.msra.mxu0 0.0
    %506 = vmatprep.subr.mxu0 0.0
    %507 = vmatpush2.msra.mxu0 0.0
    %508 = vmatprep.subr.mxu0 0.0
    %509 = vmatpush2.msra.mxu0 0.0
    %510 = vmatprep.subr.mxu0 0.0
    %511 = vmatpush2.msra.mxu0 0.0
    %512 = vmatprep.subr.mxu0 0.0
    %513 = vmatpush2.msra.mxu0 0.0
    %514 = vmatprep.mubr.f32.mxu0 0.0
    %515 = vmatmul.mubr.f32.gmra.mxu0 %v448
    %v516 = vpop.f32.mrf.mxu0
    %v517 = vadd.f32 0.0, %v516
    %v518 = vpop.f32.mrf.mxu0
    %v519 = vadd.f32 0.0, %v518
    %520 = vdwg.mxu0
    %v523 = vrot.slane %v517, 4
    %v524 = vrot.slane %v519, 4
    %v527 = vadd.f32 %v226, %v523
    %v528 = vadd.f32 %v227, %v524
    %v529 = vmul.f32 %v189, %v527
    %v530 = vmul.f32 %v190, %v528
    %v531 = vtanh.pop %v529
    %v532 = vtanh.pop %v530
    %v533 = vmul.f32 %v189, %v531
    %v534 = vmul.f32 %v190, %v532
    %v535 = vadd.f32 %v533, %v191
    %v536 = vadd.f32 %v534, %v192
    %v538 = vrot.slane %v439, 6
    %v540 = vmul.f32 %v535, %v538
    %542 = vrot.lane.b32.xlu0 %v536, 64
    %v543 = vpop.permute.xlu0 %542
    %v545 = vmul.f32 %v535, %v543
    %547 = vrot.lane.b32.xlu0 %v545, 64
    %v548 = vpop.permute.xlu0 %547
    %v550 = vadd.f32 %v540, %v548
    %v551 = vtanh.pop %v550
    %553 = vrot.lane.b32.xlu0 %v551, 64
    %v554 = vpop.permute.xlu0 %553
    %v556 = vmul.f32 %v536, %v554
    %v558 = vrot.slane %v556, 4
    %v559 = vsel %vm228, %v558, 0
    %561 = vmatprep.subr.mxu0 0.0
    %562 = vmatpush1.msra.mxu0 0.0
    %563 = vmatprep.subr.mxu0 0.0
    %564 = vmatpush1.msra.mxu0 0.0
    %565 = vmatprep.subr.mxu0 0.0
    %566 = vmatpush1.msra.mxu0 0.0
    %567 = vmatprep.subr.mxu0 0.0
    %568 = vmatpush1.msra.mxu0 0.0
    %569 = vmatprep.subr.mxu0 0.0
    %570 = vmatpush1.msra.mxu0 0.0
    %571 = vmatprep.subr.mxu0 0.0
    %572 = vmatpush1.msra.mxu0 0.0
    %573 = vmatprep.subr.mxu0 0.0
    %574 = vmatpush1.msra.mxu0 0.0
    %575 = vmatprep.subr.mxu0 0.0
    %576 = vmatpush1.msra.mxu0 0.0
    %577 = vmatprep.subr.mxu0 %v185
    %578 = vmatpush1.msra.mxu0 %v184
    %579 = vmatprep.subr.mxu0 %v183
    %580 = vmatpush1.msra.mxu0 %v182
    %581 = vmatprep.subr.mxu0 %v181
    %582 = vmatpush1.msra.mxu0 %v180
    %583 = vmatprep.subr.mxu0 %v179
    %584 = vmatpush1.msra.mxu0 %v178
    %585 = vmatprep.subr.mxu0 %v177
    %586 = vmatpush1.msra.mxu0 %v176
    %587 = vmatprep.subr.mxu0 %v175
    %588 = vmatpush1.msra.mxu0 %v174
    %589 = vmatprep.subr.mxu0 %v173
    %590 = vmatpush1.msra.mxu0 %v172
    %591 = vmatprep.subr.mxu0 %v171
    %592 = vmatpush1.msra.mxu0 %v170
    %593 = vmatprep.subr.mxu0 0.0
    %594 = vmatpush2.msra.mxu0 0.0
    %595 = vmatprep.subr.mxu0 0.0
    %596 = vmatpush2.msra.mxu0 0.0
    %597 = vmatprep.subr.mxu0 0.0
    %598 = vmatpush2.msra.mxu0 0.0
    %599 = vmatprep.subr.mxu0 0.0
    %600 = vmatpush2.msra.mxu0 0.0
    %601 = vmatprep.subr.mxu0 0.0
    %602 = vmatpush2.msra.mxu0 0.0
    %603 = vmatprep.subr.mxu0 0.0
    %604 = vmatpush2.msra.mxu0 0.0
    %605 = vmatprep.subr.mxu0 0.0
    %606 = vmatpush2.msra.mxu0 0.0
    %607 = vmatprep.subr.mxu0 0.0
    %608 = vmatpush2.msra.mxu0 0.0
    %609 = vmatprep.subr.mxu0 0.0
    %610 = vmatpush2.msra.mxu0 0.0
    %611 = vmatprep.subr.mxu0 0.0
    %612 = vmatpush2.msra.mxu0 0.0
    %613 = vmatprep.subr.mxu0 0.0
    %614 = vmatpush2.msra.mxu0 0.0
    %615 = vmatprep.subr.mxu0 0.0
    %616 = vmatpush2.msra.mxu0 0.0
    %617 = vmatprep.subr.mxu0 0.0
    %618 = vmatpush2.msra.mxu0 0.0
    %619 = vmatprep.subr.mxu0 0.0
    %620 = vmatpush2.msra.mxu0 0.0
    %621 = vmatprep.subr.mxu0 0.0
    %622 = vmatpush2.msra.mxu0 0.0
    %623 = vmatprep.subr.mxu0 0.0
    %624 = vmatpush2.msra.mxu0 0.0
    %625 = vmatprep.mubr.f32.mxu0 0.0
    %626 = vmatmul.mubr.f32.gmra.mxu0 %v559
    %v627 = vpop.f32.mrf.mxu0
    %v628 = vadd.f32 0.0, %v627
    %v629 = vpop.f32.mrf.mxu0
    %v630 = vadd.f32 0.0, %v629
    %631 = vdwg.mxu0
    %v634 = vrot.slane %v628, 2
    %v635 = vrot.slane %v630, 2
    %v638 = vadd.f32 %v334, %v634
    %v639 = vadd.f32 %v335, %v635
    %v640 = vmul.f32 %v189, %v638
    %v641 = vmul.f32 %v190, %v639
    %v642 = vtanh.pop %v640
    %v643 = vtanh.pop %v641
    %v644 = vmul.f32 %v189, %v642
    %v645 = vmul.f32 %v190, %v643
    %v646 = vadd.f32 %v644, %v191
    %v647 = vadd.f32 %v645, %v192
    %v649 = vrot.slane %v550, 6
    %v651 = vmul.f32 %v646, %v649
    %653 = vrot.lane.b32.xlu0 %v647, 64
    %v654 = vpop.permute.xlu0 %653
    %v656 = vmul.f32 %v646, %v654
    %658 = vrot.lane.b32.xlu0 %v656, 64
    %v659 = vpop.permute.xlu0 %658
    %v661 = vadd.f32 %v651, %v659
    %v662 = vtanh.pop %v661
    %664 = vrot.lane.b32.xlu0 %v662, 64
    %v665 = vpop.permute.xlu0 %664
    %v667 = vmul.f32 %v647, %v665
    %v670 = vrot.slane %v160, 6
    %v671 = vrot.slane %v162, 6
    %v674 = vsel %vm217, %v166, %v670
    %v675 = vsel %vm218, %v168, %v671
    %v677 = vrot.slane %v667, 6
    %v678 = vsel %vm228, %v677, 0
    %680 = vmatprep.subr.mxu0 0.0
    %681 = vmatpush1.msra.mxu0 0.0
    %682 = vmatprep.subr.mxu0 0.0
    %683 = vmatpush1.msra.mxu0 0.0
    %684 = vmatprep.subr.mxu0 0.0
    %685 = vmatpush1.msra.mxu0 0.0
    %686 = vmatprep.subr.mxu0 0.0
    %687 = vmatpush1.msra.mxu0 0.0
    %688 = vmatprep.subr.mxu0 0.0
    %689 = vmatpush1.msra.mxu0 0.0
    %690 = vmatprep.subr.mxu0 0.0
    %691 = vmatpush1.msra.mxu0 0.0
    %692 = vmatprep.subr.mxu0 0.0
    %693 = vmatpush1.msra.mxu0 0.0
    %694 = vmatprep.subr.mxu0 0.0
    %695 = vmatpush1.msra.mxu0 0.0
    %696 = vmatprep.subr.mxu0 %v185
    %697 = vmatpush1.msra.mxu0 %v184
    %698 = vmatprep.subr.mxu0 %v183
    %699 = vmatpush1.msra.mxu0 %v182
    %700 = vmatprep.subr.mxu0 %v181
    %701 = vmatpush1.msra.mxu0 %v180
    %702 = vmatprep.subr.mxu0 %v179
    %703 = vmatpush1.msra.mxu0 %v178
    %704 = vmatprep.subr.mxu0 %v177
    %705 = vmatpush1.msra.mxu0 %v176
    %706 = vmatprep.subr.mxu0 %v175
    %707 = vmatpush1.msra.mxu0 %v174
    %708 = vmatprep.subr.mxu0 %v173
    %709 = vmatpush1.msra.mxu0 %v172
    %710 = vmatprep.subr.mxu0 %v171
    %711 = vmatpush1.msra.mxu0 %v170
    %712 = vmatprep.subr.mxu0 0.0
    %713 = vmatpush2.msra.mxu0 0.0
    %714 = vmatprep.subr.mxu0 0.0
    %715 = vmatpush2.msra.mxu0 0.0
    %716 = vmatprep.subr.mxu0 0.0
    %717 = vmatpush2.msra.mxu0 0.0
    %718 = vmatprep.subr.mxu0 0.0
    %719 = vmatpush2.msra.mxu0 0.0
    %720 = vmatprep.subr.mxu0 0.0
    %721 = vmatpush2.msra.mxu0 0.0
    %722 = vmatprep.subr.mxu0 0.0
    %723 = vmatpush2.msra.mxu0 0.0
    %724 = vmatprep.subr.mxu0 0.0
    %725 = vmatpush2.msra.mxu0 0.0
    %726 = vmatprep.subr.mxu0 0.0
    %727 = vmatpush2.msra.mxu0 0.0
    %728 = vmatprep.subr.mxu0 0.0
    %729 = vmatpush2.msra.mxu0 0.0
    %730 = vmatprep.subr.mxu0 0.0
    %731 = vmatpush2.msra.mxu0 0.0
    %732 = vmatprep.subr.mxu0 0.0
    %733 = vmatpush2.msra.mxu0 0.0
    %734 = vmatprep.subr.mxu0 0.0
    %735 = vmatpush2.msra.mxu0 0.0
    %736 = vmatprep.subr.mxu0 0.0
    %737 = vmatpush2.msra.mxu0 0.0
    %738 = vmatprep.subr.mxu0 0.0
    %739 = vmatpush2.msra.mxu0 0.0
    %740 = vmatprep.subr.mxu0 0.0
    %741 = vmatpush2.msra.mxu0 0.0
    %742 = vmatprep.subr.mxu0 0.0
    %743 = vmatpush2.msra.mxu0 0.0
    %744 = vmatprep.mubr.f32.mxu0 0.0
    %745 = vmatmul.mubr.f32.gmra.mxu0 %v678
    %v746 = vpop.f32.mrf.mxu0
    %v747 = vadd.f32 0.0, %v746
    %v748 = vpop.f32.mrf.mxu0
    %v749 = vadd.f32 0.0, %v748
    %750 = vdwg.mxu0
    %v751 = vadd.f32 %v674, %v747
    %v752 = vadd.f32 %v675, %v749
    %v753 = vmul.f32 %v189, %v751
    %v754 = vmul.f32 %v190, %v752
    %v755 = vtanh.pop %v753
    %v756 = vtanh.pop %v754
    %v757 = vmul.f32 %v189, %v755
    %v758 = vmul.f32 %v190, %v756
    %v759 = vadd.f32 %v757, %v191
    %v760 = vadd.f32 %v758, %v192
    %v762 = vrot.slane %v661, 6
    %v764 = vmul.f32 %v759, %v762
    %766 = vrot.lane.b32.xlu0 %v760, 64
    %v767 = vpop.permute.xlu0 %766
    %v769 = vmul.f32 %v759, %v767
    %771 = vrot.lane.b32.xlu0 %v769, 64
    %v772 = vpop.permute.xlu0 %771
    %v774 = vadd.f32 %v764, %v772
    %v775 = vtanh.pop %v774
    %777 = vrot.lane.b32.xlu0 %v775, 64
    %v778 = vpop.permute.xlu0 %777
    %v780 = vmul.f32 %v760, %v778
    %v781 = vrot.slane %v160, 2
    %v782 = vrot.slane %v162, 2
    %v785 = vsel %vm217, %v166, %v781
    %v786 = vsel %vm218, %v168, %v782
    %v788 = vsel %vm228, %v780, 0
    %790 = vmatprep.subr.mxu0 0.0
    %791 = vmatpush1.msra.mxu0 0.0
    %792 = vmatprep.subr.mxu0 0.0
    %793 = vmatpush1.msra.mxu0 0.0
    %794 = vmatprep.subr.mxu0 0.0
    %795 = vmatpush1.msra.mxu0 0.0
    %796 = vmatprep.subr.mxu0 0.0
    %797 = vmatpush1.msra.mxu0 0.0
    %798 = vmatprep.subr.mxu0 0.0
    %799 = vmatpush1.msra.mxu0 0.0
    %800 = vmatprep.subr.mxu0 0.0
    %801 = vmatpush1.msra.mxu0 0.0
    %802 = vmatprep.subr.mxu0 0.0
    %803 = vmatpush1.msra.mxu0 0.0
    %804 = vmatprep.subr.mxu0 0.0
    %805 = vmatpush1.msra.mxu0 0.0
    %806 = vmatprep.subr.mxu0 %v185
    %807 = vmatpush1.msra.mxu0 %v184
    %808 = vmatprep.subr.mxu0 %v183
    %809 = vmatpush1.msra.mxu0 %v182
    %810 = vmatprep.subr.mxu0 %v181
    %811 = vmatpush1.msra.mxu0 %v180
    %812 = vmatprep.subr.mxu0 %v179
    %813 = vmatpush1.msra.mxu0 %v178
    %814 = vmatprep.subr.mxu0 %v177
    %815 = vmatpush1.msra.mxu0 %v176
    %816 = vmatprep.subr.mxu0 %v175
    %817 = vmatpush1.msra.mxu0 %v174
    %818 = vmatprep.subr.mxu0 %v173
    %819 = vmatpush1.msra.mxu0 %v172
    %820 = vmatprep.subr.mxu0 %v171
    %821 = vmatpush1.msra.mxu0 %v170
    %822 = vmatprep.subr.mxu0 0.0
    %823 = vmatpush2.msra.mxu0 0.0
    %824 = vmatprep.subr.mxu0 0.0
    %825 = vmatpush2.msra.mxu0 0.0
    %826 = vmatprep.subr.mxu0 0.0
    %827 = vmatpush2.msra.mxu0 0.0
    %828 = vmatprep.subr.mxu0 0.0
    %829 = vmatpush2.msra.mxu0 0.0
    %830 = vmatprep.subr.mxu0 0.0
    %831 = vmatpush2.msra.mxu0 0.0
    %832 = vmatprep.subr.mxu0 0.0
    %833 = vmatpush2.msra.mxu0 0.0
    %834 = vmatprep.subr.mxu0 0.0
    %835 = vmatpush2.msra.mxu0 0.0
    %836 = vmatprep.subr.mxu0 0.0
    %837 = vmatpush2.msra.mxu0 0.0
    %838 = vmatprep.subr.mxu0 0.0
    %839 = vmatpush2.msra.mxu0 0.0
    %840 = vmatprep.subr.mxu0 0.0
    %841 = vmatpush2.msra.mxu0 0.0
    %842 = vmatprep.subr.mxu0 0.0
    %843 = vmatpush2.msra.mxu0 0.0
    %844 = vmatprep.subr.mxu0 0.0
    %845 = vmatpush2.msra.mxu0 0.0
    %846 = vmatprep.subr.mxu0 0.0
    %847 = vmatpush2.msra.mxu0 0.0
    %848 = vmatprep.subr.mxu0 0.0
    %849 = vmatpush2.msra.mxu0 0.0
    %850 = vmatprep.subr.mxu0 0.0
    %851 = vmatpush2.msra.mxu0 0.0
    %852 = vmatprep.subr.mxu0 0.0
    %853 = vmatpush2.msra.mxu0 0.0
    %854 = vmatprep.mubr.f32.mxu0 0.0
    %855 = vmatmul.mubr.f32.gmra.mxu0 %v788
    %v856 = vpop.f32.mrf.mxu0
    %v857 = vadd.f32 0.0, %v856
    %v858 = vpop.f32.mrf.mxu0
    %v859 = vadd.f32 0.0, %v858
    %860 = vdwg.mxu0
    %v863 = vrot.slane %v857, 6
    %v864 = vrot.slane %v859, 6
    %v867 = vadd.f32 %v785, %v863
    %v868 = vadd.f32 %v786, %v864
    %v869 = vmul.f32 %v189, %v867
    %v870 = vmul.f32 %v190, %v868
    %v871 = vtanh.pop %v869
    %v872 = vtanh.pop %v870
    %v873 = vmul.f32 %v189, %v871
    %v874 = vmul.f32 %v190, %v872
    %v875 = vadd.f32 %v873, %v191
    %v876 = vadd.f32 %v874, %v192
    %v878 = vrot.slane %v774, 6
    %v880 = vmul.f32 %v875, %v878
    %882 = vrot.lane.b32.xlu0 %v876, 64
    %v883 = vpop.permute.xlu0 %882
    %v885 = vmul.f32 %v875, %v883
    %887 = vrot.lane.b32.xlu0 %v885, 64
    %v888 = vpop.permute.xlu0 %887
    %v890 = vadd.f32 %v880, %v888
    %v891 = vtanh.pop %v890
    %893 = vrot.lane.b32.xlu0 %v891, 64
    %v894 = vpop.permute.xlu0 %893
    %v896 = vmul.f32 %v876, %v894
    %v898 = vrot.slane %v896, 2
    %v899 = vsel %vm228, %v898, 0
    %901 = vmatprep.subr.mxu0 0.0
    %902 = vmatpush1.msra.mxu0 0.0
    %903 = vmatprep.subr.mxu0 0.0
    %904 = vmatpush1.msra.mxu0 0.0
    %905 = vmatprep.subr.mxu0 0.0
    %906 = vmatpush1.msra.mxu0 0.0
    %907 = vmatprep.subr.mxu0 0.0
    %908 = vmatpush1.msra.mxu0 0.0
    %909 = vmatprep.subr.mxu0 0.0
    %910 = vmatpush1.msra.mxu0 0.0
    %911 = vmatprep.subr.mxu0 0.0
    %912 = vmatpush1.msra.mxu0 0.0
    %913 = vmatprep.subr.mxu0 0.0
    %914 = vmatpush1.msra.mxu0 0.0
    %915 = vmatprep.subr.mxu0 0.0
    %916 = vmatpush1.msra.mxu0 0.0
    %917 = vmatprep.subr.mxu0 %v185
    %918 = vmatpush1.msra.mxu0 %v184
    %919 = vmatprep.subr.mxu0 %v183
    %920 = vmatpush1.msra.mxu0 %v182
    %921 = vmatprep.subr.mxu0 %v181
    %922 = vmatpush1.msra.mxu0 %v180
    %923 = vmatprep.subr.mxu0 %v179
    %924 = vmatpush1.msra.mxu0 %v178
    %925 = vmatprep.subr.mxu0 %v177
    %926 = vmatpush1.msra.mxu0 %v176
    %927 = vmatprep.subr.mxu0 %v175
    %928 = vmatpush1.msra.mxu0 %v174
    %929 = vmatprep.subr.mxu0 %v173
    %930 = vmatpush1.msra.mxu0 %v172
    %931 = vmatprep.subr.mxu0 %v171
    %932 = vmatpush1.msra.mxu0 %v170
    %933 = vmatprep.subr.mxu0 0.0
    %934 = vmatpush2.msra.mxu0 0.0
    %935 = vmatprep.subr.mxu0 0.0
    %936 = vmatpush2.msra.mxu0 0.0
    %937 = vmatprep.subr.mxu0 0.0
    %938 = vmatpush2.msra.mxu0 0.0
    %939 = vmatprep.subr.mxu0 0.0
    %940 = vmatpush2.msra.mxu0 0.0
    %941 = vmatprep.subr.mxu0 0.0
    %942 = vmatpush2.msra.mxu0 0.0
    %943 = vmatprep.subr.mxu0 0.0
    %944 = vmatpush2.msra.mxu0 0.0
    %945 = vmatprep.subr.mxu0 0.0
    %946 = vmatpush2.msra.mxu0 0.0
    %947 = vmatprep.subr.mxu0 0.0
    %948 = vmatpush2.msra.mxu0 0.0
    %949 = vmatprep.subr.mxu0 0.0
    %950 = vmatpush2.msra.mxu0 0.0
    %951 = vmatprep.subr.mxu0 0.0
    %952 = vmatpush2.msra.mxu0 0.0
    %953 = vmatprep.subr.mxu0 0.0
    %954 = vmatpush2.msra.mxu0 0.0
    %955 = vmatprep.subr.mxu0 0.0
    %956 = vmatpush2.msra.mxu0 0.0
    %957 = vmatprep.subr.mxu0 0.0
    %958 = vmatpush2.msra.mxu0 0.0
    %959 = vmatprep.subr.mxu0 0.0
    %960 = vmatpush2.msra.mxu0 0.0
    %961 = vmatprep.subr.mxu0 0.0
    %962 = vmatpush2.msra.mxu0 0.0
    %963 = vmatprep.subr.mxu0 0.0
    %964 = vmatpush2.msra.mxu0 0.0
    %965 = vmatprep.mubr.f32.mxu0 0.0
    %966 = vmatmul.mubr.f32.gmra.mxu0 %v899
    %v967 = vpop.f32.mrf.mxu0
    %v968 = vadd.f32 0.0, %v967
    %v969 = vpop.f32.mrf.mxu0
    %v970 = vadd.f32 0.0, %v969
    %971 = vdwg.mxu0
    %v974 = vrot.slane %v968, 4
    %v975 = vrot.slane %v970, 4
    %v978 = vadd.f32 %v674, %v974
    %v979 = vadd.f32 %v675, %v975
    %v980 = vmul.f32 %v189, %v978
    %v981 = vmul.f32 %v190, %v979
    %v982 = vtanh.pop %v980
    %v983 = vtanh.pop %v981
    %v984 = vmul.f32 %v189, %v982
    %v985 = vmul.f32 %v190, %v983
    %v986 = vadd.f32 %v984, %v191
    %v987 = vadd.f32 %v985, %v192
    %v989 = vrot.slane %v890, 6
    %v991 = vmul.f32 %v986, %v989
    %993 = vrot.lane.b32.xlu0 %v987, 64
    %v994 = vpop.permute.xlu0 %993
    %v996 = vmul.f32 %v986, %v994
    %998 = vrot.lane.b32.xlu0 %v996, 64
    %v999 = vpop.permute.xlu0 %998
    %v1001 = vadd.f32 %v991, %v999
    %v1002 = vtanh.pop %v1001
    %1004 = vrot.lane.b32.xlu0 %v1002, 64
    %v1005 = vpop.permute.xlu0 %1004
    %v1007 = vmul.f32 %v987, %v1005
    %v1009 = vrot.slane %v1007, 4
    %v1010 = vsel %vm228, %v1009, 0
    %1012 = vmatprep.subr.mxu0 0.0
    %1013 = vmatpush1.msra.mxu0 0.0
    %1014 = vmatprep.subr.mxu0 0.0
    %1015 = vmatpush1.msra.mxu0 0.0
    %1016 = vmatprep.subr.mxu0 0.0
    %1017 = vmatpush1.msra.mxu0 0.0
    %1018 = vmatprep.subr.mxu0 0.0
    %1019 = vmatpush1.msra.mxu0 0.0
    %1020 = vmatprep.subr.mxu0 0.0
    %1021 = vmatpush1.msra.mxu0 0.0
    %1022 = vmatprep.subr.mxu0 0.0
    %1023 = vmatpush1.msra.mxu0 0.0
    %1024 = vmatprep.subr.mxu0 0.0
    %1025 = vmatpush1.msra.mxu0 0.0
    %1026 = vmatprep.subr.mxu0 0.0
    %1027 = vmatpush1.msra.mxu0 0.0
    %1028 = vmatprep.subr.mxu0 %v185
    %1029 = vmatpush1.msra.mxu0 %v184
    %1030 = vmatprep.subr.mxu0 %v183
    %1031 = vmatpush1.msra.mxu0 %v182
    %1032 = vmatprep.subr.mxu0 %v181
    %1033 = vmatpush1.msra.mxu0 %v180
    %1034 = vmatprep.subr.mxu0 %v179
    %1035 = vmatpush1.msra.mxu0 %v178
    %1036 = vmatprep.subr.mxu0 %v177
    %1037 = vmatpush1.msra.mxu0 %v176
    %1038 = vmatprep.subr.mxu0 %v175
    %1039 = vmatpush1.msra.mxu0 %v174
    %1040 = vmatprep.subr.mxu0 %v173
    %1041 = vmatpush1.msra.mxu0 %v172
    %1042 = vmatprep.subr.mxu0 %v171
    %1043 = vmatpush1.msra.mxu0 %v170
    %1044 = vmatprep.subr.mxu0 0.0
    %1045 = vmatpush2.msra.mxu0 0.0
    %1046 = vmatprep.subr.mxu0 0.0
    %1047 = vmatpush2.msra.mxu0 0.0
    %1048 = vmatprep.subr.mxu0 0.0
    %1049 = vmatpush2.msra.mxu0 0.0
    %1050 = vmatprep.subr.mxu0 0.0
    %1051 = vmatpush2.msra.mxu0 0.0
    %1052 = vmatprep.subr.mxu0 0.0
    %1053 = vmatpush2.msra.mxu0 0.0
    %1054 = vmatprep.subr.mxu0 0.0
    %1055 = vmatpush2.msra.mxu0 0.0
    %1056 = vmatprep.subr.mxu0 0.0
    %1057 = vmatpush2.msra.mxu0 0.0
    %1058 = vmatprep.subr.mxu0 0.0
    %1059 = vmatpush2.msra.mxu0 0.0
    %1060 = vmatprep.subr.mxu0 0.0
    %1061 = vmatpush2.msra.mxu0 0.0
    %1062 = vmatprep.subr.mxu0 0.0
    %1063 = vmatpush2.msra.mxu0 0.0
    %1064 = vmatprep.subr.mxu0 0.0
    %1065 = vmatpush2.msra.mxu0 0.0
    %1066 = vmatprep.subr.mxu0 0.0
    %1067 = vmatpush2.msra.mxu0 0.0
    %1068 = vmatprep.subr.mxu0 0.0
    %1069 = vmatpush2.msra.mxu0 0.0
    %1070 = vmatprep.subr.mxu0 0.0
    %1071 = vmatpush2.msra.mxu0 0.0
    %1072 = vmatprep.subr.mxu0 0.0
    %1073 = vmatpush2.msra.mxu0 0.0
    %1074 = vmatprep.subr.mxu0 0.0
    %1075 = vmatpush2.msra.mxu0 0.0
    %1076 = vmatprep.mubr.f32.mxu0 0.0
    %1077 = vmatmul.mubr.f32.gmra.mxu0 %v1010
    %v1078 = vpop.f32.mrf.mxu0
    %v1079 = vadd.f32 0.0, %v1078
    %v1080 = vpop.f32.mrf.mxu0
    %v1081 = vadd.f32 0.0, %v1080
    %1082 = vdwg.mxu0
    %v1085 = vrot.slane %v1079, 2
    %v1086 = vrot.slane %v1081, 2
    %v1089 = vadd.f32 %v785, %v1085
    %v1090 = vadd.f32 %v786, %v1086
    %v1091 = vmul.f32 %v189, %v1089
    %v1092 = vmul.f32 %v190, %v1090
    %v1093 = vtanh.pop %v1091
    %v1094 = vtanh.pop %v1092
    %v1095 = vmul.f32 %v189, %v1093
    %v1096 = vmul.f32 %v190, %v1094
    %v1097 = vadd.f32 %v1095, %v191
    %v1098 = vadd.f32 %v1096, %v192
    %v1100 = vrot.slane %v1001, 6
    %v1102 = vmul.f32 %v1097, %v1100
    %1104 = vrot.lane.b32.xlu0 %v1098, 64
    %v1105 = vpop.permute.xlu0 %1104
    %v1107 = vmul.f32 %v1097, %v1105
    %1109 = vrot.lane.b32.xlu0 %v1107, 64
    %v1110 = vpop.permute.xlu0 %1109
    %v1112 = vadd.f32 %v1102, %v1110
    %v1113 = vtanh.pop %v1112
    %1115 = vrot.lane.b32.xlu0 %v1113, 64
    %v1116 = vpop.permute.xlu0 %1115
    %v1118 = vmul.f32 %v1098, %v1116
    %v1120 = vrot.slane %v1118, 6
    %v1122 = vsel %vm219, %v329, %v1120
    %v1123 = vrot.slane %v1007, 2
    %v1125 = vsel %vm219, %v445, %v1123
    %v1126 = vrot.slane %v896, 6
    %v1128 = vsel %vm219, %v556, %v1126
    %v1129 = vrot.slane %v780, 2
    %v1131 = vsel %vm219, %v667, %v1129
    %v1133 = vsel %vm219, %v780, %v677
    %v1134 = vrot.slane %v556, 2
    %v1136 = vsel %vm219, %v896, %v1134
    %v1137 = vrot.slane %v445, 6
    %v1139 = vsel %vm219, %v1007, %v1137
    %v1140 = vrot.slane %v329, 2
    %v1142 = vsel %vm219, %v1118, %v1140
    %v1144 = vrot.slane %v1125, 1
    %v1147 = vrot.slane %v1128, 2
    %v1150 = vrot.slane %v1131, 3
    %v1153 = vrot.slane %v1133, 4
    %v1156 = vrot.slane %v1136, 5
    %v1159 = vrot.slane %v1139, 6
    %v1162 = vrot.slane %v1142, 7
    %vm1164 = vcmask 1040384
    %v1165 = vsel %vm1164, %v1122, %v1144
    %vm1166 = vcmask 1041408
    %v1167 = vsel %vm1166, %v1165, %v1147
    %vm1168 = vcmask 1042432
    %v1169 = vsel %vm1168, %v1167, %v1150
    %vm1170 = vcmask 1043456
    %v1171 = vsel %vm1170, %v1169, %v1153
    %vm1172 = vcmask 1044480
    %v1173 = vsel %vm1172, %v1171, %v1156
    %vm1174 = vcmask 1045504
    %v1175 = vsel %vm1174, %v1173, %v1159
    %vm1176 = vcmask 1046528
    %v1177 = vsel %vm1176, %v1175, %v1162
    %v1179 = vrot.slane %v1122, 1
    %v1181 = vrot.slane %v1125, 2
    %v1183 = vrot.slane %v1128, 3
    %v1185 = vrot.slane %v1131, 4
    %v1187 = vrot.slane %v1133, 5
    %v1189 = vrot.slane %v1136, 6
    %v1191 = vrot.slane %v1139, 7
    %v1193 = vsel %vm1164, %v1179, %v1181
    %v1194 = vsel %vm1166, %v1193, %v1183
    %v1195 = vsel %vm1168, %v1194, %v1185
    %v1196 = vsel %vm1170, %v1195, %v1187
    %v1197 = vsel %vm1172, %v1196, %v1189
    %v1198 = vsel %vm1174, %v1197, %v1191
    %v1199 = vsel %vm1176, %v1198, %v1142
    %v1200 = vld [vmem:[%s2] sm:$0xff]
    %v1201 = vld [vmem:[%s2 + $0x8] sm:$0xff]
    %v1202 = vld [vmem:[%s2 + $0x10] sm:$0xff]
    %v1203 = vld [vmem:[%s2 + $0x18] sm:$0xff]
    %v1204 = vld [vmem:[%s2 + $0x20] sm:$0xff]
    %v1205 = vld [vmem:[%s2 + $0x28] sm:$0xff]
    %v1206 = vld [vmem:[%s2 + $0x30] sm:$0xff]
    %v1207 = vld [vmem:[%s2 + $0x38] sm:$0xff]
    %v1208 = vld [vmem:[%s2 + $0x40] sm:$0x1]
    %v1209 = vld [vmem:[%s2 + $0x48] sm:$0xff]
    %v1210 = vld [vmem:[%s2 + $0x50] sm:$0xff]
    %v1211 = vld [vmem:[%s2 + $0x58] sm:$0xff]
    %v1212 = vld [vmem:[%s2 + $0x60] sm:$0xff]
    %v1213 = vld [vmem:[%s2 + $0x68] sm:$0x1]
    %v1214 = vlaneseq
    %v1215 = vshrl.u32 %v1214, 7
    %v1216 = vsub.s32 0, %v1215
    %v1217 = vrot.slane %v1208, %v1216
    %v1219 = vsel %vm228, %v1177, 0
    %v1222 = vsel %vm228, %v1199, 0
    %1224 = vmatprep.subr.mxu0 0.0
    %1225 = vmatpush1.msra.mxu0 0.0
    %1226 = vmatprep.subr.mxu0 0.0
    %1227 = vmatpush1.msra.mxu0 0.0
    %1228 = vmatprep.subr.mxu0 0.0
    %1229 = vmatpush1.msra.mxu0 0.0
    %1230 = vmatprep.subr.mxu0 0.0
    %1231 = vmatpush1.msra.mxu0 0.0
    %1232 = vmatprep.subr.mxu0 0.0
    %1233 = vmatpush1.msra.mxu0 0.0
    %1234 = vmatprep.subr.mxu0 0.0
    %1235 = vmatpush1.msra.mxu0 0.0
    %1236 = vmatprep.subr.mxu0 0.0
    %1237 = vmatpush1.msra.mxu0 0.0
    %1238 = vmatprep.subr.mxu0 0.0
    %1239 = vmatpush1.msra.mxu0 0.0
    %1240 = vmatprep.subr.mxu0 0.0
    %1241 = vmatpush1.msra.mxu0 %v1207
    %1242 = vmatprep.subr.mxu0 0.0
    %1243 = vmatpush1.msra.mxu0 %v1206
    %1244 = vmatprep.subr.mxu0 0.0
    %1245 = vmatpush1.msra.mxu0 %v1205
    %1246 = vmatprep.subr.mxu0 0.0
    %1247 = vmatpush1.msra.mxu0 %v1204
    %1248 = vmatprep.subr.mxu0 0.0
    %1249 = vmatpush1.msra.mxu0 %v1203
    %1250 = vmatprep.subr.mxu0 0.0
    %1251 = vmatpush1.msra.mxu0 %v1202
    %1252 = vmatprep.subr.mxu0 0.0
    %1253 = vmatpush1.msra.mxu0 %v1201
    %1254 = vmatprep.subr.mxu0 0.0
    %1255 = vmatpush1.msra.mxu0 %v1200
    %1256 = vmatprep.subr.mxu0 0.0
    %1257 = vmatpush2.msra.mxu0 0.0
    %1258 = vmatprep.subr.mxu0 0.0
    %1259 = vmatpush2.msra.mxu0 0.0
    %1260 = vmatprep.subr.mxu0 0.0
    %1261 = vmatpush2.msra.mxu0 0.0
    %1262 = vmatprep.subr.mxu0 0.0
    %1263 = vmatpush2.msra.mxu0 0.0
    %1264 = vmatprep.subr.mxu0 0.0
    %1265 = vmatpush2.msra.mxu0 0.0
    %1266 = vmatprep.subr.mxu0 0.0
    %1267 = vmatpush2.msra.mxu0 0.0
    %1268 = vmatprep.subr.mxu0 0.0
    %1269 = vmatpush2.msra.mxu0 0.0
    %1270 = vmatprep.subr.mxu0 0.0
    %1271 = vmatpush2.msra.mxu0 0.0
    %1272 = vmatprep.subr.mxu0 0.0
    %1273 = vmatpush2.msra.mxu0 0.0
    %1274 = vmatprep.subr.mxu0 0.0
    %1275 = vmatpush2.msra.mxu0 0.0
    %1276 = vmatprep.subr.mxu0 0.0
    %1277 = vmatpush2.msra.mxu0 0.0
    %1278 = vmatprep.subr.mxu0 0.0
    %1279 = vmatpush2.msra.mxu0 0.0
    %1280 = vmatprep.subr.mxu0 0.0
    %1281 = vmatpush2.msra.mxu0 0.0
    %1282 = vmatprep.subr.mxu0 0.0
    %1283 = vmatpush2.msra.mxu0 0.0
    %1284 = vmatprep.subr.mxu0 0.0
    %1285 = vmatpush2.msra.mxu0 0.0
    %1286 = vmatprep.subr.mxu0 0.0
    %1287 = vmatpush2.msra.mxu0 0.0
    %1288 = vmatprep.mubr.f32.mxu0 0.0
    %1289 = vmatmul.mubr.f32.gmra.mxu0 %v1219
    %v1290 = vpop.f32.mrf.mxu0
    %v1291 = vadd.f32 %v1217, %v1290
    %v1292 = vpop.f32.mrf.mxu0
    %1293 = vmatprep.mubr.f32.mxu0 0.0
    %1294 = vmatmul.mubr.f32.gmra.mxu0 %v1222
    %v1295 = vpop.f32.mrf.mxu0
    %v1296 = vadd.f32 %v1217, %v1295
    %v1297 = vpop.f32.mrf.mxu0
    %1298 = vdwg.mxu0
    %v1299 = vtanh.pop %v1291
    %v1300 = vtanh.pop %v1296
    %v1301 = vlaneseq
    %v1302 = vshrl.u32 %v1301, 7
    %v1303 = vsub.s32 0, %v1302
    %v1304 = vrot.slane %v1213, %v1303
    %vm1305 = vcmask 261120
    %v1307 = vsel %vm1305, %v1299, 0
    %v1310 = vsel %vm1305, %v1300, 0
    %1312 = vmatprep.subr.mxu0 0.0
    %1313 = vmatpush1.msra.mxu0 0.0
    %1314 = vmatprep.subr.mxu0 0.0
    %1315 = vmatpush1.msra.mxu0 0.0
    %1316 = vmatprep.subr.mxu0 0.0
    %1317 = vmatpush1.msra.mxu0 0.0
    %1318 = vmatprep.subr.mxu0 0.0
    %1319 = vmatpush1.msra.mxu0 0.0
    %1320 = vmatprep.subr.mxu0 0.0
    %1321 = vmatpush1.msra.mxu0 0.0
    %1322 = vmatprep.subr.mxu0 0.0
    %1323 = vmatpush1.msra.mxu0 0.0
    %1324 = vmatprep.subr.mxu0 0.0
    %1325 = vmatpush1.msra.mxu0 0.0
    %1326 = vmatprep.subr.mxu0 0.0
    %1327 = vmatpush1.msra.mxu0 0.0
    %1328 = vmatprep.subr.mxu0 0.0
    %1329 = vmatpush1.msra.mxu0 0.0
    %1330 = vmatprep.subr.mxu0 0.0
    %1331 = vmatpush1.msra.mxu0 0.0
    %1332 = vmatprep.subr.mxu0 0.0
    %1333 = vmatpush1.msra.mxu0 0.0
    %1334 = vmatprep.subr.mxu0 0.0
    %1335 = vmatpush1.msra.mxu0 0.0
    %1336 = vmatprep.subr.mxu0 0.0
    %1337 = vmatpush1.msra.mxu0 %v1212
    %1338 = vmatprep.subr.mxu0 0.0
    %1339 = vmatpush1.msra.mxu0 %v1211
    %1340 = vmatprep.subr.mxu0 0.0
    %1341 = vmatpush1.msra.mxu0 %v1210
    %1342 = vmatprep.subr.mxu0 0.0
    %1343 = vmatpush1.msra.mxu0 %v1209
    %1344 = vmatprep.subr.mxu0 0.0
    %1345 = vmatpush2.msra.mxu0 0.0
    %1346 = vmatprep.subr.mxu0 0.0
    %1347 = vmatpush2.msra.mxu0 0.0
    %1348 = vmatprep.subr.mxu0 0.0
    %1349 = vmatpush2.msra.mxu0 0.0
    %1350 = vmatprep.subr.mxu0 0.0
    %1351 = vmatpush2.msra.mxu0 0.0
    %1352 = vmatprep.subr.mxu0 0.0
    %1353 = vmatpush2.msra.mxu0 0.0
    %1354 = vmatprep.subr.mxu0 0.0
    %1355 = vmatpush2.msra.mxu0 0.0
    %1356 = vmatprep.subr.mxu0 0.0
    %1357 = vmatpush2.msra.mxu0 0.0
    %1358 = vmatprep.subr.mxu0 0.0
    %1359 = vmatpush2.msra.mxu0 0.0
    %1360 = vmatprep.subr.mxu0 0.0
    %1361 = vmatpush2.msra.mxu0 0.0
    %1362 = vmatprep.subr.mxu0 0.0
    %1363 = vmatpush2.msra.mxu0 0.0
    %1364 = vmatprep.subr.mxu0 0.0
    %1365 = vmatpush2.msra.mxu0 0.0
    %1366 = vmatprep.subr.mxu0 0.0
    %1367 = vmatpush2.msra.mxu0 0.0
    %1368 = vmatprep.subr.mxu0 0.0
    %1369 = vmatpush2.msra.mxu0 0.0
    %1370 = vmatprep.subr.mxu0 0.0
    %1371 = vmatpush2.msra.mxu0 0.0
    %1372 = vmatprep.subr.mxu0 0.0
    %1373 = vmatpush2.msra.mxu0 0.0
    %1374 = vmatprep.subr.mxu0 0.0
    %1375 = vmatpush2.msra.mxu0 0.0
    %1376 = vmatprep.mubr.f32.mxu0 0.0
    %1377 = vmatmul.mubr.f32.gmra.mxu0 %v1307
    %v1378 = vpop.f32.mrf.mxu0
    %v1379 = vadd.f32 %v1304, %v1378
    %v1380 = vpop.f32.mrf.mxu0
    %1381 = vmatprep.mubr.f32.mxu0 0.0
    %1382 = vmatmul.mubr.f32.gmra.mxu0 %v1310
    %v1383 = vpop.f32.mrf.mxu0
    %v1384 = vadd.f32 %v1304, %v1383
    %v1385 = vpop.f32.mrf.mxu0
    %1386 = vdwg.mxu0
    %1387 = vxpose.xlu0.b32.start [1/16] %v1379, 128
    %1388 = vxpose.xlu0.b32.cont [2/16] 0.0, 128
    %1389 = vxpose.xlu0.b32.cont [3/16] 0.0, 128
    %1390 = vxpose.xlu0.b32.cont [4/16] 0.0, 128
    %1391 = vxpose.xlu0.b32.cont [5/16] 0.0, 128
    %1392 = vxpose.xlu0.b32.cont [6/16] 0.0, 128
    %1393 = vxpose.xlu0.b32.cont [7/16] 0.0, 128
    %1394 = vxpose.xlu0.b32.cont [8/16] 0.0, 128
    %1395 = vxpose.xlu0.b32.cont [9/16] 0.0, 128
    %1396 = vxpose.xlu0.b32.cont [10/16] 0.0, 128
    %1397 = vxpose.xlu0.b32.cont [11/16] 0.0, 128
    %1398 = vxpose.xlu0.b32.cont [12/16] 0.0, 128
    %1399 = vxpose.xlu0.b32.cont [13/16] 0.0, 128
    %1400 = vxpose.xlu0.b32.cont [14/16] 0.0, 128
    %1401 = vxpose.xlu0.b32.cont [15/16] 0.0, 128
    %1402 = vxpose.xlu0.b32.end [16/16] 0.0, 128
    %v1403 = vpop.trf.xlu0
    %v1404 = vpop.trf.xlu0
    %v1405 = vpop.trf.xlu0
    %v1406 = vpop.trf.xlu0
    %v1407 = vpop.trf.xlu0
    %v1408 = vpop.trf.xlu0
    %v1409 = vpop.trf.xlu0
    %v1410 = vpop.trf.xlu0
    %v1411 = vpop.trf.xlu0
    %v1412 = vpop.trf.xlu0
    %v1413 = vpop.trf.xlu0
    %v1414 = vpop.trf.xlu0
    %v1415 = vpop.trf.xlu0
    %v1416 = vpop.trf.xlu0
    %v1417 = vpop.trf.xlu0
    %v1418 = vpop.trf.xlu0
    %vm1419 = vcmask 64512
    %v1420 = vsel %vm1419, %v1403, -inf
    %1421 = vmax.xlane.f32.xlu0 %v1420
    %v1422 = vpop.xlane.xlu0 %1421
    %v1423 = vsub.f32 %v1403, %v1422
    %v1424 = vmul.f32 %v1423, 1.442695
    %v1425 = vpow.pop %v1424
    %v1426 = vsel %vm1419, %v1425, 0.0
    %1427 = vadd.xlane.f32.xlu0 %v1426
    %v1428 = vpop.xlane.xlu0 %1427
    %v1429 = vrcp.pop %v1428
    %v1430 = vmul.f32 %v1425, %v1429
    %v1432 = vsel %vm1419, %v1430, 0
    %1434 = vmatprep.subr.mxu0 0.0
    %1435 = vmatpush1.msra.mxu0 0.0
    %1436 = vmatprep.subr.mxu0 0.0
    %1437 = vmatpush1.msra.mxu0 0.0
    %1438 = vmatprep.subr.mxu0 0.0
    %1439 = vmatpush1.msra.mxu0 0.0
    %1440 = vmatprep.subr.mxu0 0.0
    %1441 = vmatpush1.msra.mxu0 0.0
    %1442 = vmatprep.subr.mxu0 0.0
    %1443 = vmatpush1.msra.mxu0 0.0
    %1444 = vmatprep.subr.mxu0 0.0
    %1445 = vmatpush1.msra.mxu0 0.0
    %1446 = vmatprep.subr.mxu0 0.0
    %1447 = vmatpush1.msra.mxu0 0.0
    %1448 = vmatprep.subr.mxu0 0.0
    %1449 = vmatpush1.msra.mxu0 0.0
    %1450 = vmatprep.subr.mxu0 0.0
    %1451 = vmatpush1.msra.mxu0 0.0
    %1452 = vmatprep.subr.mxu0 0.0
    %1453 = vmatpush1.msra.mxu0 0.0
    %1454 = vmatprep.subr.mxu0 0.0
    %1455 = vmatpush1.msra.mxu0 0.0
    %1456 = vmatprep.subr.mxu0 0.0
    %1457 = vmatpush1.msra.mxu0 0.0
    %1458 = vmatprep.subr.mxu0 0.0
    %1459 = vmatpush1.msra.mxu0 0.0
    %1460 = vmatprep.subr.mxu0 0.0
    %1461 = vmatpush1.msra.mxu0 0.0
    %1462 = vmatprep.subr.mxu0 0.0
    %1463 = vmatpush1.msra.mxu0 0.0
    %1464 = vmatprep.subr.mxu0 0.0
    %1465 = vmatpush1.msra.mxu0 %v1177
    %1466 = vmatprep.subr.mxu0 0.0
    %1467 = vmatpush2.msra.mxu0 0.0
    %1468 = vmatprep.subr.mxu0 0.0
    %1469 = vmatpush2.msra.mxu0 0.0
    %1470 = vmatprep.subr.mxu0 0.0
    %1471 = vmatpush2.msra.mxu0 0.0
    %1472 = vmatprep.subr.mxu0 0.0
    %1473 = vmatpush2.msra.mxu0 0.0
    %1474 = vmatprep.subr.mxu0 0.0
    %1475 = vmatpush2.msra.mxu0 0.0
    %1476 = vmatprep.subr.mxu0 0.0
    %1477 = vmatpush2.msra.mxu0 0.0
    %1478 = vmatprep.subr.mxu0 0.0
    %1479 = vmatpush2.msra.mxu0 0.0
    %1480 = vmatprep.subr.mxu0 0.0
    %1481 = vmatpush2.msra.mxu0 0.0
    %1482 = vmatprep.subr.mxu0 0.0
    %1483 = vmatpush2.msra.mxu0 0.0
    %1484 = vmatprep.subr.mxu0 0.0
    %1485 = vmatpush2.msra.mxu0 0.0
    %1486 = vmatprep.subr.mxu0 0.0
    %1487 = vmatpush2.msra.mxu0 0.0
    %1488 = vmatprep.subr.mxu0 0.0
    %1489 = vmatpush2.msra.mxu0 0.0
    %1490 = vmatprep.subr.mxu0 0.0
    %1491 = vmatpush2.msra.mxu0 0.0
    %1492 = vmatprep.subr.mxu0 0.0
    %1493 = vmatpush2.msra.mxu0 0.0
    %1494 = vmatprep.subr.mxu0 0.0
    %1495 = vmatpush2.msra.mxu0 0.0
    %1496 = vmatprep.subr.mxu0 0.0
    %1497 = vmatpush2.msra.mxu0 0.0
    %1498 = vmatprep.mubr.f32.mxu0 0.0
    %1499 = vmatmul.mubr.f32.gmra.mxu0 %v1432
    %v1500 = vpop.f32.mrf.mxu0
    %v1501 = vadd.f32 0.0, %v1500
    %v1502 = vpop.f32.mrf.mxu0
    %1503 = vdwg.mxu0
    %v1504 = vsel %vm228, %v1501, -inf
    %1505 = vmax.xlane.f32.xlu0 %v1504
    %v1506 = vpop.xlane.xlu0 %1505
    %1507 = vxpose.xlu0.b32.start [1/16] %v1384, 128
    %1508 = vxpose.xlu0.b32.cont [2/16] 0.0, 128
    %1509 = vxpose.xlu0.b32.cont [3/16] 0.0, 128
    %1510 = vxpose.xlu0.b32.cont [4/16] 0.0, 128
    %1511 = vxpose.xlu0.b32.cont [5/16] 0.0, 128
    %1512 = vxpose.xlu0.b32.cont [6/16] 0.0, 128
    %1513 = vxpose.xlu0.b32.cont [7/16] 0.0, 128
    %1514 = vxpose.xlu0.b32.cont [8/16] 0.0, 128
    %1515 = vxpose.xlu0.b32.cont [9/16] 0.0, 128
    %1516 = vxpose.xlu0.b32.cont [10/16] 0.0, 128
    %1517 = vxpose.xlu0.b32.cont [11/16] 0.0, 128
    %1518 = vxpose.xlu0.b32.cont [12/16] 0.0, 128
    %1519 = vxpose.xlu0.b32.cont [13/16] 0.0, 128
    %1520 = vxpose.xlu0.b32.cont [14/16] 0.0, 128
    %1521 = vxpose.xlu0.b32.cont [15/16] 0.0, 128
    %1522 = vxpose.xlu0.b32.end [16/16] 0.0, 128
    %v1523 = vpop.trf.xlu0
    %v1524 = vpop.trf.xlu0
    %v1525 = vpop.trf.xlu0
    %v1526 = vpop.trf.xlu0
    %v1527 = vpop.trf.xlu0
    %v1528 = vpop.trf.xlu0
    %v1529 = vpop.trf.xlu0
    %v1530 = vpop.trf.xlu0
    %v1531 = vpop.trf.xlu0
    %v1532 = vpop.trf.xlu0
    %v1533 = vpop.trf.xlu0
    %v1534 = vpop.trf.xlu0
    %v1535 = vpop.trf.xlu0
    %v1536 = vpop.trf.xlu0
    %v1537 = vpop.trf.xlu0
    %v1538 = vpop.trf.xlu0
    %v1539 = vsel %vm1419, %v1523, -inf
    %1540 = vmax.xlane.f32.xlu0 %v1539
    %v1541 = vpop.xlane.xlu0 %1540
    %v1542 = vsub.f32 %v1523, %v1541
    %v1543 = vmul.f32 %v1542, 1.442695
    %v1544 = vpow.pop %v1543
    %v1545 = vsel %vm1419, %v1544, 0.0
    %1546 = vadd.xlane.f32.xlu0 %v1545
    %v1547 = vpop.xlane.xlu0 %1546
    %v1548 = vrcp.pop %v1547
    %v1549 = vmul.f32 %v1544, %v1548
    %v1551 = vsel %vm1419, %v1549, 0
    %1553 = vmatprep.subr.mxu0 0.0
    %1554 = vmatpush1.msra.mxu0 0.0
    %1555 = vmatprep.subr.mxu0 0.0
    %1556 = vmatpush1.msra.mxu0 0.0
    %1557 = vmatprep.subr.mxu0 0.0
    %1558 = vmatpush1.msra.mxu0 0.0
    %1559 = vmatprep.subr.mxu0 0.0
    %1560 = vmatpush1.msra.mxu0 0.0
    %1561 = vmatprep.subr.mxu0 0.0
    %1562 = vmatpush1.msra.mxu0 0.0
    %1563 = vmatprep.subr.mxu0 0.0
    %1564 = vmatpush1.msra.mxu0 0.0
    %1565 = vmatprep.subr.mxu0 0.0
    %1566 = vmatpush1.msra.mxu0 0.0
    %1567 = vmatprep.subr.mxu0 0.0
    %1568 = vmatpush1.msra.mxu0 0.0
    %1569 = vmatprep.subr.mxu0 0.0
    %1570 = vmatpush1.msra.mxu0 0.0
    %1571 = vmatprep.subr.mxu0 0.0
    %1572 = vmatpush1.msra.mxu0 0.0
    %1573 = vmatprep.subr.mxu0 0.0
    %1574 = vmatpush1.msra.mxu0 0.0
    %1575 = vmatprep.subr.mxu0 0.0
    %1576 = vmatpush1.msra.mxu0 0.0
    %1577 = vmatprep.subr.mxu0 0.0
    %1578 = vmatpush1.msra.mxu0 0.0
    %1579 = vmatprep.subr.mxu0 0.0
    %1580 = vmatpush1.msra.mxu0 0.0
    %1581 = vmatprep.subr.mxu0 0.0
    %1582 = vmatpush1.msra.mxu0 0.0
    %1583 = vmatprep.subr.mxu0 0.0
    %1584 = vmatpush1.msra.mxu0 %v1199
    %1585 = vmatprep.subr.mxu0 0.0
    %1586 = vmatpush2.msra.mxu0 0.0
    %1587 = vmatprep.subr.mxu0 0.0
    %1588 = vmatpush2.msra.mxu0 0.0
    %1589 = vmatprep.subr.mxu0 0.0
    %1590 = vmatpush2.msra.mxu0 0.0
    %1591 = vmatprep.subr.mxu0 0.0
    %1592 = vmatpush2.msra.mxu0 0.0
    %1593 = vmatprep.subr.mxu0 0.0
    %1594 = vmatpush2.msra.mxu0 0.0
    %1595 = vmatprep.subr.mxu0 0.0
    %1596 = vmatpush2.msra.mxu0 0.0
    %1597 = vmatprep.subr.mxu0 0.0
    %1598 = vmatpush2.msra.mxu0 0.0
    %1599 = vmatprep.subr.mxu0 0.0
    %1600 = vmatpush2.msra.mxu0 0.0
    %1601 = vmatprep.subr.mxu0 0.0
    %1602 = vmatpush2.msra.mxu0 0.0
    %1603 = vmatprep.subr.mxu0 0.0
    %1604 = vmatpush2.msra.mxu0 0.0
    %1605 = vmatprep.subr.mxu0 0.0
    %1606 = vmatpush2.msra.mxu0 0.0
    %1607 = vmatprep.subr.mxu0 0.0
    %1608 = vmatpush2.msra.mxu0 0.0
    %1609 = vmatprep.subr.mxu0 0.0
    %1610 = vmatpush2.msra.mxu0 0.0
    %1611 = vmatprep.subr.mxu0 0.0
    %1612 = vmatpush2.msra.mxu0 0.0
    %1613 = vmatprep.subr.mxu0 0.0
    %1614 = vmatpush2.msra.mxu0 0.0
    %1615 = vmatprep.subr.mxu0 0.0
    %1616 = vmatpush2.msra.mxu0 0.0
    %1617 = vmatprep.mubr.f32.mxu0 0.0
    %1618 = vmatmul.mubr.f32.gmra.mxu0 %v1551
    %v1619 = vpop.f32.mrf.mxu0
    %v1620 = vadd.f32 0.0, %v1619
    %v1621 = vpop.f32.mrf.mxu0
    %1622 = vdwg.mxu0
    %v1623 = vsel %vm228, %v1620, -inf
    %1624 = vmax.xlane.f32.xlu0 %v1623
    %v1625 = vpop.xlane.xlu0 %1624
    %1626 = vst.msk [vmem:[#allocation6] sm:$0xff] %vm1419, %v1430
    %1627 = vst.msk [vmem:[#allocation6 + $0x8] sm:$0xff] %vm1419, %v1549
    %v1629 = vlaneseq
    %v1630 = vshrl.u32 %v1629, 7
    %v1631 = vsub.s32 %v35, %v1630
    %v1632 = vrot.slane %v1506, %v1631
    %v1635 = vlaneseq
    %v1636 = vshrl.u32 %v1635, 7
    %v1637 = vsub.s32 %v35, %v1636
    %v1638 = vrot.slane %v1625, %v1637
    %v1640 = vsel %vm1164, %v1632, %v1638
    %v1641 = vld [vmem:[%s2 + $0x70] sm:$0xff]
    %v1642 = vld [vmem:[%s2 + $0x78] sm:$0x1]
    %v1643 = vld [vmem:[%s2 + $0x80] sm:$0xff]
    %v1644 = vld [vmem:[%s2 + $0x88] sm:$0xff]
    %v1645 = vld [vmem:[%s2 + $0x90] sm:$0xff]
    %v1646 = vld [vmem:[%s2 + $0x98] sm:$0xff]
    %v1647 = vld [vmem:[%s2 + $0xa0] sm:$0x1]
    %v1648 = vlaneseq
    %v1649 = vshrl.u32 %v1648, 7
    %v1650 = vsub.s32 0, %v1649
    %v1651 = vrot.slane %v1642, %v1650
    %v1653 = vsel %vm1419, %v1640, 0
    %1655 = vmatprep.subr.mxu0 0.0
    %1656 = vmatpush1.msra.mxu0 0.0
    %1657 = vmatprep.subr.mxu0 0.0
    %1658 = vmatpush1.msra.mxu0 0.0
    %1659 = vmatprep.subr.mxu0 0.0
    %1660 = vmatpush1.msra.mxu0 0.0
    %1661 = vmatprep.subr.mxu0 0.0
    %1662 = vmatpush1.msra.mxu0 0.0
    %1663 = vmatprep.subr.mxu0 0.0
    %1664 = vmatpush1.msra.mxu0 0.0
    %1665 = vmatprep.subr.mxu0 0.0
    %1666 = vmatpush1.msra.mxu0 0.0
    %1667 = vmatprep.subr.mxu0 0.0
    %1668 = vmatpush1.msra.mxu0 0.0
    %1669 = vmatprep.subr.mxu0 0.0
    %1670 = vmatpush1.msra.mxu0 0.0
    %1671 = vmatprep.subr.mxu0 0.0
    %1672 = vmatpush1.msra.mxu0 0.0
    %1673 = vmatprep.subr.mxu0 0.0
    %1674 = vmatpush1.msra.mxu0 0.0
    %1675 = vmatprep.subr.mxu0 0.0
    %1676 = vmatpush1.msra.mxu0 0.0
    %1677 = vmatprep.subr.mxu0 0.0
    %1678 = vmatpush1.msra.mxu0 0.0
    %1679 = vmatprep.subr.mxu0 0.0
    %1680 = vmatpush1.msra.mxu0 0.0
    %1681 = vmatprep.subr.mxu0 0.0
    %1682 = vmatpush1.msra.mxu0 0.0
    %1683 = vmatprep.subr.mxu0 0.0
    %1684 = vmatpush1.msra.mxu0 0.0
    %1685 = vmatprep.subr.mxu0 0.0
    %1686 = vmatpush1.msra.mxu0 %v1641
    %1687 = vmatprep.subr.mxu0 0.0
    %1688 = vmatpush2.msra.mxu0 0.0
    %1689 = vmatprep.subr.mxu0 0.0
    %1690 = vmatpush2.msra.mxu0 0.0
    %1691 = vmatprep.subr.mxu0 0.0
    %1692 = vmatpush2.msra.mxu0 0.0
    %1693 = vmatprep.subr.mxu0 0.0
    %1694 = vmatpush2.msra.mxu0 0.0
    %1695 = vmatprep.subr.mxu0 0.0
    %1696 = vmatpush2.msra.mxu0 0.0
    %1697 = vmatprep.subr.mxu0 0.0
    %1698 = vmatpush2.msra.mxu0 0.0
    %1699 = vmatprep.subr.mxu0 0.0
    %1700 = vmatpush2.msra.mxu0 0.0
    %1701 = vmatprep.subr.mxu0 0.0
    %1702 = vmatpush2.msra.mxu0 0.0
    %1703 = vmatprep.subr.mxu0 0.0
    %1704 = vmatpush2.msra.mxu0 0.0
    %1705 = vmatprep.subr.mxu0 0.0
    %1706 = vmatpush2.msra.mxu0 0.0
    %1707 = vmatprep.subr.mxu0 0.0
    %1708 = vmatpush2.msra.mxu0 0.0
    %1709 = vmatprep.subr.mxu0 0.0
    %1710 = vmatpush2.msra.mxu0 0.0
    %1711 = vmatprep.subr.mxu0 0.0
    %1712 = vmatpush2.msra.mxu0 0.0
    %1713 = vmatprep.subr.mxu0 0.0
    %1714 = vmatpush2.msra.mxu0 0.0
    %1715 = vmatprep.subr.mxu0 0.0
    %1716 = vmatpush2.msra.mxu0 0.0
    %1717 = vmatprep.subr.mxu0 0.0
    %1718 = vmatpush2.msra.mxu0 0.0
    %1719 = vmatprep.mubr.f32.mxu0 0.0
    %1720 = vmatmul.mubr.f32.gmra.mxu0 %v1653
    %v1721 = vpop.f32.mrf.mxu0
    %v1722 = vadd.f32 %v1651, %v1721
    %v1723 = vpop.f32.mrf.mxu0
    %1724 = vdwg.mxu0
    %v1725 = vmax.f32 %v1722, 0.0
    %v1726 = vlaneseq
    %v1727 = vshrl.u32 %v1726, 7
    %v1728 = vsub.s32 0, %v1727
    %v1729 = vrot.slane %v1647, %v1728
    %v1731 = vsel %vm1305, %v1725, 0
    %1733 = vmatprep.subr.mxu0 0.0
    %1734 = vmatpush1.msra.mxu0 0.0
    %1735 = vmatprep.subr.mxu0 0.0
    %1736 = vmatpush1.msra.mxu0 0.0
    %1737 = vmatprep.subr.mxu0 0.0
    %1738 = vmatpush1.msra.mxu0 0.0
    %1739 = vmatprep.subr.mxu0 0.0
    %1740 = vmatpush1.msra.mxu0 0.0
    %1741 = vmatprep.subr.mxu0 0.0
    %1742 = vmatpush1.msra.mxu0 0.0
    %1743 = vmatprep.subr.mxu0 0.0
    %1744 = vmatpush1.msra.mxu0 0.0
    %1745 = vmatprep.subr.mxu0 0.0
    %1746 = vmatpush1.msra.mxu0 0.0
    %1747 = vmatprep.subr.mxu0 0.0
    %1748 = vmatpush1.msra.mxu0 0.0
    %1749 = vmatprep.subr.mxu0 0.0
    %1750 = vmatpush1.msra.mxu0 0.0
    %1751 = vmatprep.subr.mxu0 0.0
    %1752 = vmatpush1.msra.mxu0 0.0
    %1753 = vmatprep.subr.mxu0 0.0
    %1754 = vmatpush1.msra.mxu0 0.0
    %1755 = vmatprep.subr.mxu0 0.0
    %1756 = vmatpush1.msra.mxu0 0.0
    %1757 = vmatprep.subr.mxu0 0.0
    %1758 = vmatpush1.msra.mxu0 %v1646
    %1759 = vmatprep.subr.mxu0 0.0
    %1760 = vmatpush1.msra.mxu0 %v1645
    %1761 = vmatprep.subr.mxu0 0.0
    %1762 = vmatpush1.msra.mxu0 %v1644
    %1763 = vmatprep.subr.mxu0 0.0
    %1764 = vmatpush1.msra.mxu0 %v1643
    %1765 = vmatprep.subr.mxu0 0.0
    %1766 = vmatpush2.msra.mxu0 0.0
    %1767 = vmatprep.subr.mxu0 0.0
    %1768 = vmatpush2.msra.mxu0 0.0
    %1769 = vmatprep.subr.mxu0 0.0
    %1770 = vmatpush2.msra.mxu0 0.0
    %1771 = vmatprep.subr.mxu0 0.0
    %1772 = vmatpush2.msra.mxu0 0.0
    %1773 = vmatprep.subr.mxu0 0.0
    %1774 = vmatpush2.msra.mxu0 0.0
    %1775 = vmatprep.subr.mxu0 0.0
    %1776 = vmatpush2.msra.mxu0 0.0
    %1777 = vmatprep.subr.mxu0 0.0
    %1778 = vmatpush2.msra.mxu0 0.0
    %1779 = vmatprep.subr.mxu0 0.0
    %1780 = vmatpush2.msra.mxu0 0.0
    %1781 = vmatprep.subr.mxu0 0.0
    %1782 = vmatpush2.msra.mxu0 0.0
    %1783 = vmatprep.subr.mxu0 0.0
    %1784 = vmatpush2.msra.mxu0 0.0
    %1785 = vmatprep.subr.mxu0 0.0
    %1786 = vmatpush2.msra.mxu0 0.0
    %1787 = vmatprep.subr.mxu0 0.0
    %1788 = vmatpush2.msra.mxu0 0.0
    %1789 = vmatprep.subr.mxu0 0.0
    %1790 = vmatpush2.msra.mxu0 0.0
    %1791 = vmatprep.subr.mxu0 0.0
    %1792 = vmatpush2.msra.mxu0 0.0
    %1793 = vmatprep.subr.mxu0 0.0
    %1794 = vmatpush2.msra.mxu0 0.0
    %1795 = vmatprep.subr.mxu0 0.0
    %1796 = vmatpush2.msra.mxu0 0.0
    %1797 = vmatprep.mubr.f32.mxu0 0.0
    %1798 = vmatmul.mubr.f32.gmra.mxu0 %v1731
    %v1799 = vpop.f32.mrf.mxu0
    %v1800 = vadd.f32 %v1729, %v1799
    %v1801 = vpop.f32.mrf.mxu0
    %1802 = vdwg.mxu0
    %vm1803 = vcmask 25600
    %v1804 = vsel %vm1803, %v1800, -inf
    %1805 = vmax.xlane.f32.xlu0 %v1804
    %v1806 = vpop.xlane.xlu0 %1805
    %v1807 = vsub.f32 %v1800, %v1806
    %v1808 = vmul.f32 %v1807, 1.442695
    %v1809 = vpow.pop %v1808
    %v1810 = vsel %vm1803, %v1809, 0.0
    %1811 = vadd.xlane.f32.xlu0 %v1810
    %v1812 = vpop.xlane.xlu0 %1811
    %v1813 = vrcp.pop %v1812
    %v1814 = vmul.f32 %v1809, %v1813
    %1815 = vst.msk [vmem:[#allocation5] sm:$0x3] %vm1803, %v1814
    // Predicated region
    $region18: #{prm_forward.1} parent=1 // pred_check
      _
    $region19: #{prm_forward.1} parent=1 // pred_check_branch
      %1817 = sbr.rel (0) target = $region21
    $region20: #{prm_forward.1} parent=1 // pred_region
      %s1819 = ssub.s32 32, 32
      %1820 = vsyncadd [#allocation4], %s1819
      %s1822 = sshll.u32 [#allocation5], 4
      %s1823 = int_to_ptr.vmem [resolvable:$true] %s1822
      %1825 = dma.vmem_to_hbm [thread:$0]  %s1823, 32, %s3, [#allocation4]
    $region21: #{prm_forward.1} parent=1 // pred_fallthru
      _
    // Predicated region
    $region22: #{prm_forward.1} parent=1 // pred_check
      _
    $region23: #{prm_forward.1} parent=1 // pred_check_branch
      %1827 = sbr.rel (0) target = $region25
    $region24: #{prm_forward.1} parent=1 // pred_region
      %s1829 = ssub.s32 256, 256
      %1830 = vsyncadd [#allocation7], %s1829
      %s1831 = sshll.u32 [#allocation6], 4
      %s1832 = int_to_ptr.vmem [resolvable:$true] %s1831
      %1837 = dma.vmem_to_hbm [thread:$0]  %s1832, 256, %s4, [#allocation7], 128, 128, 8
    $region25: #{prm_forward.1} parent=1 // pred_fallthru
      _
    // Predicated region
    $region26: #{prm_forward.1} parent=1 // pred_check
      _
    $region27: #{prm_forward.1} parent=1 // pred_check_branch
      %1839 = sbr.rel (0) target = $region29
    $region28: #{prm_forward.1} parent=1 // pred_region
      %1840 = dma.done [#allocation4], 32
    $region29: #{prm_forward.1} parent=1 // pred_fallthru
      _
    // Predicated region
    $region30: #{prm_forward.1} parent=1 // pred_check
      _
    $region31: #{prm_forward.1} parent=1 // pred_check_branch
      %1842 = sbr.rel (0) target = $region33
    $region32: #{prm_forward.1} parent=1 // pred_region
      %1843 = dma.done [#allocation7], 256
    $region33: #{prm_forward.1} parent=1 // pred_fallthru
      _
    %1844 = vsyncpa [#allocation3], 1
    %1845 = vsyncpa [#allocation4], 1
    %1846 = vsyncpa [#allocation7], 1

</llo_original>
